<compile_context>
chip_gen: v6e
topology: v6e:2x2x1
jax: 0.10.0
libtpu: 0.0.40
codegen_flags: <defaults>
</compile_context>

<pallas_src>
import functools

import numpy as np
import jax
import jax.numpy as jnp
from jax.experimental import pallas as pl
from jax.experimental.pallas import tpu as pltpu


# ------------------------------- helpers ------------------------------------------

def _round_up(x, m):
    return ((x + m - 1) // m) * m


def _vmem_capacity_bytes():
    """Physical VMEM per core; fall back to the smallest generation (v7x, 64 MiB)."""
    try:
        return int(pltpu.get_tpu_info().vmem_capacity_bytes)
    except Exception:
        return 64 << 20


def _choose_batch_tile(b_eff, d_eff, w_resident_bytes, x_elt, out_elt, budget):
    """Pick the batch tile.

    Policy (review items): avoid padded rows, avoid degenerate 1-step grids for large
    batches (>=3 steps per v7x core), keep tiles MXU-shaped when possible, and account
    for double-buffered activation blocks plus the single-buffered resident W.
    """
    def act_bytes(tb):
        return 2 * tb * d_eff * (x_elt + out_elt)   # double-buffered x + out blocks

    # Tiny effective batch: one full-extent block (a block dim equal to the full array
    # dim is always legal, no 8-divisibility needed) -> zero padded rows, 1 grid step.
    if b_eff <= 256 and w_resident_bytes + act_bytes(b_eff) <= budget:
        return b_eff

    cap = max(8, (b_eff // 8) * 8)                  # never exceed the array extent
    cands = [c for c in (4096, 2048, 1024, 512, 384, 256, 192, 128, 96, 64, 48, 32, 24, 16, 8)
             if c <= cap and w_resident_bytes + act_bytes(c) <= budget]
    if not cands:
        # TODO(synk): when W alone is too big for VMEM, add an output-column grid axis
        # with (D, TN) weight tiles + f32 accumulator instead of shrinking the batch tile.
        return 8

    best_tb, best_key = None, None
    for tb in cands:
        nblk = -(-b_eff // tb)
        padded_rows = nblk * tb - b_eff             # pure padding traffic in the last block
        # Cost proxy: padded-row traffic + ~0.35us/step overhead (charged as ~32 rows/step);
        # nudge towards >=6 grid steps (>=3 per v7x TensorCore) when the batch is large
        # enough that tiles stay MXU-shaped (>=256 rows).
        cost = padded_rows + 32 * nblk
        if nblk < 6 and b_eff >= 6 * 256:
            cost += b_eff // 8
        key = (cost, -tb)
        if best_key is None or key < best_key:
            best_tb, best_key = tb, key
    return best_tb


# ------------------------------- Pallas kernel -------------------------------------

def _invertible_mm_kernel(x_ref, w_ref, o_ref, *, compute_dtype, precision):
    # x_ref: (TB, D_eff) activation tile; w_ref: (D_eff, D_eff) VMEM-resident weights;
    # o_ref: (TB, D_eff) output tile (written in its final dtype).
    x = x_ref[...]
    w = w_ref[...]
    if compute_dtype is not None and x.dtype != compute_dtype:
        # In-kernel cast (VPU slots have slack under the MXU) -> no wrapper pass over x.
        x = x.astype(compute_dtype)
        w = w.astype(compute_dtype)
    o_ref[...] = jnp.dot(
        x, w, precision=precision, preferred_element_type=jnp.float32
    ).astype(o_ref.dtype)


# ---------------------------------- wrapper ----------------------------------------

def invertible_mm_forward(inputs, W, mode="direct", *, compute_dtype=None,
                          precision=jax.lax.Precision.HIGHEST):
    """Equivalent of InvertibleMM.forward(inputs, mode=mode).

    compute_dtype=None keeps the input dtype (f32 + HIGHEST precision by default, so the
    applied transform matches the f32 slogdet Jacobian); pass jnp.bfloat16 for MXU-native
    bf16 operands (cast happens inside the kernel).
    """
    assert inputs.ndim == 2 and W.ndim == 2 and W.shape[0] == W.shape[1]
    B, D = inputs.shape
    assert W.shape[0] == D

    # Batch-independent pieces in plain-JAX glue (outside the kernel).
    W32 = W.astype(jnp.float32)
    _, logabsdet = jnp.linalg.slogdet(W32)
    if mode == "direct":
        M = W32
        ld = logabsdet
    else:
        M = jnp.linalg.inv(W32)
        ld = -logabsdet

    # Fold small D into the lane dim: (B, D) -> (B/f, f*D) is a free bitcast reshape and
    # y = x_fold @ kron(I_f, M) reproduces x @ M row-by-row.  Kills all lane padding.
    fold = 1
    if D < 128 and 128 % D == 0 and B % (128 // D) == 0:
        fold = 128 // D
    B_eff, D_eff = B // fold, D * fold
    x_eff = inputs.reshape(B_eff, D_eff)
    M_eff = jnp.kron(jnp.eye(fold, dtype=M.dtype), M) if fold > 1 else M

    out_dtype = inputs.dtype
    x_elt = jnp.dtype(inputs.dtype).itemsize
    out_elt = jnp.dtype(out_dtype).itemsize
    w_elt = jnp.dtype(M_eff.dtype).itemsize

    capacity = _vmem_capacity_bytes()
    budget = (3 * capacity) // 4                      # ~48 MiB v7x, ~96 MiB v5e/v6e
    w_resident = D_eff * D_eff * w_elt                # single-buffered (pl.Buffered(1))
    TB = _choose_batch_tile(B_eff, D_eff, w_resident, x_elt, out_elt, budget)
    grid = (pl.cdiv(B_eff, TB),)                      # ragged tail handled in-kernel (clipped
                                                      # boundary block; rows are independent)

    vmem_needed = w_resident + 2 * TB * D_eff * (x_elt + out_elt)
    cp_kwargs = dict(dimension_semantics=("parallel",))   # shard batch axis across TCs (v7x)
    # v5e's scoped-VMEM default is ~16 MiB: raise the limit whenever we get near it.
    if vmem_needed + (4 << 20) > (16 << 20):
        cp_kwargs["vmem_limit_bytes"] = int(min(capacity, vmem_needed + (8 << 20)))

    kernel = functools.partial(_invertible_mm_kernel,
                               compute_dtype=compute_dtype, precision=precision)
    cost = pl.CostEstimate(
        flops=2 * B_eff * D_eff * D_eff,
        transcendentals=0,
        bytes_accessed=B_eff * D_eff * (x_elt + out_elt) + D_eff * D_eff * w_elt,
    )

    def run(single_buffer_w):
        w_spec_kwargs = {"pipeline_mode": pl.Buffered(1)} if single_buffer_w else {}
        return pl.pallas_call(
            kernel,
            out_shape=jax.ShapeDtypeStruct((B_eff, D_eff), out_dtype),
            grid=grid,
            in_specs=[
                pl.BlockSpec((TB, D_eff), lambda i: (i, 0)),            # batch-tiled x
                pl.BlockSpec((D_eff, D_eff), lambda i: (0, 0),          # W resident, 1 buffer
                             **w_spec_kwargs),
            ],
            out_specs=pl.BlockSpec((TB, D_eff), lambda i: (i, 0)),
            compiler_params=pltpu.CompilerParams(**cp_kwargs),
            cost_estimate=cost,
        )(x_eff, M_eff)

    try:
        y_eff = run(single_buffer_w=True)
    except Exception:
        # Older JAX without BlockSpec(pipeline_mode=...): fall back to default buffering.
        y_eff = run(single_buffer_w=False)

    y = y_eff.reshape(B, D)                           # free bitcast reshape back
    # PyTorch returns the scalar log|det W| repeated per batch element (shape (B, 1)).
    log_det = jnp.full((B, 1), ld, dtype=jnp.float32)
    return y, log_det


# ------------------------------------ main ------------------------------------------

if __name__ == "__main__":
    num_inputs = 32
    batch = 192

    key = jax.random.PRNGKey(0)
    kx, kw = jax.random.split(key)
    x = jax.random.normal(kx, (batch, num_inputs), dtype=jnp.float32)

    # nn.init.orthogonal_(W): QR of a random Gaussian, sign-fixed to be well defined.
    A = jax.random.normal(kw, (num_inputs, num_inputs), dtype=jnp.float32)
    q, r = jnp.linalg.qr(A)
    d = jnp.diag(r)
    W = q * jnp.where(d >= 0, 1.0, -1.0)[None, :]

    # ---- direct mode ----
    y, log_det = invertible_mm_forward(x, W, mode="direct")
    y = jax.block_until_ready(y)
    log_det = jax.block_until_ready(log_det)

    y_ref = np.asarray(x, dtype=np.float64) @ np.asarray(W, dtype=np.float64)
    ld_ref = np.linalg.slogdet(np.asarray(W, dtype=np.float64))[1]

    assert y.shape == (batch, num_inputs)
    assert log_det.shape == (batch, 1)
    np.testing.assert_allclose(np.asarray(y, dtype=np.float64), y_ref, rtol=1e-4, atol=1e-4)
    np.testing.assert_allclose(np.asarray(log_det),
                               np.full((batch, 1), ld_ref, dtype=np.float32),
                               rtol=0, atol=1e-3)

    # ---- inverse mode round-trip ----
    x_rec, log_det_inv = invertible_mm_forward(y, W, mode="inverse")
    x_rec = jax.block_until_ready(x_rec)
    log_det_inv = jax.block_until_ready(log_det_inv)
    np.testing.assert_allclose(np.asarray(x_rec), np.asarray(x), rtol=1e-3, atol=1e-3)
    np.testing.assert_allclose(np.asarray(log_det_inv),
                               np.full((batch, 1), -ld_ref, dtype=np.float32),
                               rtol=0, atol=1e-3)

    print("KERNEL_OK")
</pallas_src>

<mosaic_0001>
module attributes {stable_mosaic.version = 11 : i64} {
  func.func @_invertible_mm_kernel(%arg0: i32, %arg1: memref<48x128xf32, #tpu.memory_space<vmem>>, %arg2: memref<128x128xf32, #tpu.memory_space<vmem>>, %arg3: memref<48x128xf32, #tpu.memory_space<vmem>>) attributes {dimension_semantics = [#tpu.dimension_semantics<parallel>], iteration_bounds = array<i64: 1>, scalar_prefetch = 0 : i64, scratch_operands = 0 : i64, tpu.core_type = #tpu.core_type<tc>, window_params = [{transform_indices = @transform_0, window_bounds = array<i64: 48, 128>}, {pipeline_mode = #tpu.pipeline_mode<synchronous>, transform_indices = @transform_1, window_bounds = array<i64: 128, 128>}, {transform_indices = @transform_2, window_bounds = array<i64: 48, 128>}]} {
    %c0 = arith.constant 0 : index
    %c0_0 = arith.constant 0 : index
    %0 = vector.load %arg1[%c0, %c0_0] : memref<48x128xf32, #tpu.memory_space<vmem>>, vector<48x128xf32>
    %c0_1 = arith.constant 0 : index
    %c0_2 = arith.constant 0 : index
    %1 = vector.load %arg2[%c0_1, %c0_2] : memref<128x128xf32, #tpu.memory_space<vmem>>, vector<128x128xf32>
    %cst = arith.constant dense<0.000000e+00> : vector<48x128xf32>
    %2 = tpu.matmul %0, %1, %cst {dimension_numbers = #tpu.dot_dimension_numbers<[1], [0], [0], [1], [0, 0, 1, 1], [], []>, precision = #tpu.contract_precision<fp32>} : vector<48x128xf32>, vector<128x128xf32>, vector<48x128xf32> -> vector<48x128xf32>
    %c0_3 = arith.constant 0 : index
    %c0_4 = arith.constant 0 : index
    %3 = vector.load %arg3[%c0_3, %c0_4] : memref<48x128xf32, #tpu.memory_space<vmem>>, vector<48x128xf32>
    tpu.vector_store %arg3[%c0_3, %c0_4], %2 {strides = array<i32>} : memref<48x128xf32, #tpu.memory_space<vmem>>, vector<48x128xf32>,
    return
  }
  func.func @transform_0(%arg0: i32) -> (i32, i32) {
    %c0_i32 = arith.constant 0 : i32
    %c0_i32_0 = arith.constant 0 : i32
    return %arg0, %c0_i32 : i32, i32
  }
  func.func @transform_1(%arg0: i32) -> (i32, i32) {
    %c0_i32 = arith.constant 0 : i32
    %c0_i32_0 = arith.constant 0 : i32
    %c0_i32_1 = arith.constant 0 : i32
    return %c0_i32, %c0_i32_0 : i32, i32
  }
  func.func @transform_2(%arg0: i32) -> (i32, i32) {
    %c0_i32 = arith.constant 0 : i32
    %c0_i32_0 = arith.constant 0 : i32
    return %arg0, %c0_i32 : i32, i32
  }
}

module attributes {stable_mosaic.version = 11 : i64} {
  func.func @_invertible_mm_kernel(%arg0: i32, %arg1: memref<48x128xf32, #tpu.memory_space<vmem>>, %arg2: memref<128x128xf32, #tpu.memory_space<vmem>>, %arg3: memref<48x128xf32, #tpu.memory_space<vmem>>) attributes {dimension_semantics = [#tpu.dimension_semantics<parallel>], iteration_bounds = array<i64: 1>, scalar_prefetch = 0 : i64, scratch_operands = 0 : i64, tpu.core_type = #tpu.core_type<tc>, window_params = [{transform_indices = @transform_0, window_bounds = array<i64: 48, 128>}, {pipeline_mode = #tpu.pipeline_mode<synchronous>, transform_indices = @transform_1, window_bounds = array<i64: 128, 128>}, {transform_indices = @transform_2, window_bounds = array<i64: 48, 128>}]} {
    %c0 = arith.constant 0 : index
    %c0_0 = arith.constant 0 : index
    %0 = vector.load %arg1[%c0, %c0_0] : memref<48x128xf32, #tpu.memory_space<vmem>>, vector<48x128xf32>
    %c0_1 = arith.constant 0 : index
    %c0_2 = arith.constant 0 : index
    %1 = vector.load %arg2[%c0_1, %c0_2] : memref<128x128xf32, #tpu.memory_space<vmem>>, vector<128x128xf32>
    %cst = arith.constant dense<0.000000e+00> : vector<48x128xf32>
    %2 = tpu.matmul %0, %1, %cst {dimension_numbers = #tpu.dot_dimension_numbers<[1], [0], [0], [1], [0, 0, 1, 1], [], []>, precision = #tpu.contract_precision<fp32>} : vector<48x128xf32>, vector<128x128xf32>, vector<48x128xf32> -> vector<48x128xf32>
    %c0_3 = arith.constant 0 : index
    %c0_4 = arith.constant 0 : index
    %3 = vector.load %arg3[%c0_3, %c0_4] : memref<48x128xf32, #tpu.memory_space<vmem>>, vector<48x128xf32>
    tpu.vector_store %arg3[%c0_3, %c0_4], %2 {strides = array<i32>} : memref<48x128xf32, #tpu.memory_space<vmem>>, vector<48x128xf32>,
    return
  }
  func.func @transform_0(%arg0: i32) -> (i32, i32) {
    %c0_i32 = arith.constant 0 : i32
    %c0_i32_0 = arith.constant 0 : i32
    return %arg0, %c0_i32 : i32, i32
  }
  func.func @transform_1(%arg0: i32) -> (i32, i32) {
    %c0_i32 = arith.constant 0 : i32
    %c0_i32_0 = arith.constant 0 : i32
    %c0_i32_1 = arith.constant 0 : i32
    return %c0_i32, %c0_i32_0 : i32, i32
  }
  func.func @transform_2(%arg0: i32) -> (i32, i32) {
    %c0_i32 = arith.constant 0 : i32
    %c0_i32_0 = arith.constant 0 : i32
    return %arg0, %c0_i32 : i32, i32
  }
}

</mosaic_0001>

<llo_original>
// kernel: tpu_custom_call.1
$region0: #{tpu_custom_call.1}
  #allocation0 [shape = 'u32[]', space=smem, size = 0x4, offset = 0x4, fixed_abs, tag = 'smem constant byte address 0x4 - core index']
  #allocation1 [shape = 'u32[144,128]{1,0:T(1,128)}', space=vmem, size = 0x12000, scoped, tag = 'internal scratch']
  %s0 = inlined_call_operand.hbm [shape: f32[48,128], index: 0, kind: input, shape index: {}]
  %s1 = inlined_call_operand.hbm [shape: f32[128,128], index: 1, kind: input, shape index: {}]
  %s2 = inlined_call_operand.hbm [shape: f32[48,128], index: 2, kind: output, shape index: {}]
  %s3 = sld [smem:[#allocation0]]
  $region26: #{tpu_custom_call.1} parent=0
    _
  %s5 = ssub.s32 1, %s3
  %s6 = scalar_select 0, %s5, %s3
  $region1: #{tpu_custom_call.1} parent=0
    #allocation2 [shape = 'u8[24576]{0}', space=vmem, size = 0x6000, scoped, tag = 'input window, operand 0, single buffered']
    #allocation3 [shape = 's32[1]{0}', space=sflag, size = 0x4, scoped, tag = 'scoped memory for tpu_custom_call.1']
    #allocation4 [shape = 's32[1]{0}', space=sflag, size = 0x4, scoped, tag = 'scoped memory for tpu_custom_call.1']
    #allocation5 [shape = 'u8[65536]{0}', space=vmem, size = 0x10000, scoped, tag = 'input window, operand 1, single buffered']
    #allocation6 [shape = 's32[1]{0}', space=sflag, size = 0x4, scoped, tag = 'scoped memory for tpu_custom_call.1']
    #allocation7 [shape = 'u8[24576]{0}', space=vmem, size = 0x6000, scoped, tag = 'output window, operand 0, single buffered']
    %7 = vsyncpa [#allocation3], 0
    %8 = vsyncpa [#allocation6], 0
    %9 = vsyncpa [#allocation4], 0
    // Predicated region
    $region2: #{tpu_custom_call.1} parent=1 // pred_check
      _
    $region3: #{tpu_custom_call.1} parent=1 // pred_check_branch
      %11 = sbr.rel (0) target = $region5
    $region4: #{tpu_custom_call.1} parent=1 // pred_region
      %s13 = ssub.s32 768, 768
      %14 = vsyncadd [#allocation3], %s13
      %s15 = sshll.u32 [#allocation2], 4
      %s16 = int_to_ptr.vmem [resolvable:$true] %s15
      %21 = dma.hbm_to_vmem [thread:$0]  %s0, 768, %s16, [#allocation3], 128, 128, 8
    $region5: #{tpu_custom_call.1} parent=1 // pred_fallthru
      _
    // Predicated region
    $region6: #{tpu_custom_call.1} parent=1 // pred_check
      _
    $region7: #{tpu_custom_call.1} parent=1 // pred_check_branch
      %23 = sbr.rel (0) target = $region9
    $region8: #{tpu_custom_call.1} parent=1 // pred_region
      %s25 = ssub.s32 2048, 2048
      %26 = vsyncadd [#allocation6], %s25
      %s27 = sshll.u32 [#allocation5], 4
      %s28 = int_to_ptr.vmem [resolvable:$true] %s27
      %33 = dma.hbm_to_vmem [thread:$0]  %s1, 2048, %s28, [#allocation6], 128, 128, 8
    $region9: #{tpu_custom_call.1} parent=1 // pred_fallthru
      _
    // Predicated region
    $region10: #{tpu_custom_call.1} parent=1 // pred_check
      _
    $region11: #{tpu_custom_call.1} parent=1 // pred_check_branch
      %35 = sbr.rel (0) target = $region13
    $region12: #{tpu_custom_call.1} parent=1 // pred_region
      %36 = dma.done [#allocation3], 768
    $region13: #{tpu_custom_call.1} parent=1 // pred_fallthru
      _
    // Predicated region
    $region14: #{tpu_custom_call.1} parent=1 // pred_check
      _
    $region15: #{tpu_custom_call.1} parent=1 // pred_check_branch
      %38 = sbr.rel (0) target = $region17
    $region16: #{tpu_custom_call.1} parent=1 // pred_region
      %39 = dma.done [#allocation6], 2048
    $region17: #{tpu_custom_call.1} parent=1 // pred_fallthru
      _
    %v40 = vld [vmem:[#allocation2] sm:$0xff]
    %v41 = vld [vmem:[#allocation2 + $0x8] sm:$0xff]
    %v42 = vld [vmem:[#allocation2 + $0x10] sm:$0xff]
    %v43 = vld [vmem:[#allocation2 + $0x18] sm:$0xff]
    %v44 = vld [vmem:[#allocation2 + $0x20] sm:$0xff]
    %v45 = vld [vmem:[#allocation2 + $0x28] sm:$0xff]
    %v46 = vld [vmem:[#allocation5] sm:$0xff]
    %v47 = vld [vmem:[#allocation5 + $0x8] sm:$0xff]
    %v48 = vld [vmem:[#allocation5 + $0x10] sm:$0xff]
    %v49 = vld [vmem:[#allocation5 + $0x18] sm:$0xff]
    %v50 = vld [vmem:[#allocation5 + $0x20] sm:$0xff]
    %v51 = vld [vmem:[#allocation5 + $0x28] sm:$0xff]
    %v52 = vld [vmem:[#allocation5 + $0x30] sm:$0xff]
    %v53 = vld [vmem:[#allocation5 + $0x38] sm:$0xff]
    %v54 = vld [vmem:[#allocation5 + $0x40] sm:$0xff]
    %v55 = vld [vmem:[#allocation5 + $0x48] sm:$0xff]
    %v56 = vld [vmem:[#allocation5 + $0x50] sm:$0xff]
    %v57 = vld [vmem:[#allocation5 + $0x58] sm:$0xff]
    %v58 = vld [vmem:[#allocation5 + $0x60] sm:$0xff]
    %v59 = vld [vmem:[#allocation5 + $0x68] sm:$0xff]
    %v60 = vld [vmem:[#allocation5 + $0x70] sm:$0xff]
    %v61 = vld [vmem:[#allocation5 + $0x78] sm:$0xff]
    %62 = vmatprep.subr.mxu0 0.0
    %v63 = vand.u32 %v61, 4294901760
    %64 = vmatpush1.msra.mxu0 %v63
    %65 = vmatprep.subr.mxu0 0.0
    %v66 = vand.u32 %v60, 4294901760
    %67 = vmatpush1.msra.mxu0 %v66
    %68 = vmatprep.subr.mxu0 0.0
    %v69 = vand.u32 %v59, 4294901760
    %70 = vmatpush1.msra.mxu0 %v69
    %71 = vmatprep.subr.mxu0 0.0
    %v72 = vand.u32 %v58, 4294901760
    %73 = vmatpush1.msra.mxu0 %v72
    %74 = vmatprep.subr.mxu0 0.0
    %v75 = vand.u32 %v57, 4294901760
    %76 = vmatpush1.msra.mxu0 %v75
    %77 = vmatprep.subr.mxu0 0.0
    %v78 = vand.u32 %v56, 4294901760
    %79 = vmatpush1.msra.mxu0 %v78
    %80 = vmatprep.subr.mxu0 0.0
    %v81 = vand.u32 %v55, 4294901760
    %82 = vmatpush1.msra.mxu0 %v81
    %83 = vmatprep.subr.mxu0 0.0
    %v84 = vand.u32 %v54, 4294901760
    %85 = vmatpush1.msra.mxu0 %v84
    %86 = vmatprep.subr.mxu0 0.0
    %v87 = vand.u32 %v53, 4294901760
    %88 = vmatpush1.msra.mxu0 %v87
    %89 = vmatprep.subr.mxu0 0.0
    %v90 = vand.u32 %v52, 4294901760
    %91 = vmatpush1.msra.mxu0 %v90
    %92 = vmatprep.subr.mxu0 0.0
    %v93 = vand.u32 %v51, 4294901760
    %94 = vmatpush1.msra.mxu0 %v93
    %95 = vmatprep.subr.mxu0 0.0
    %v96 = vand.u32 %v50, 4294901760
    %97 = vmatpush1.msra.mxu0 %v96
    %98 = vmatprep.subr.mxu0 0.0
    %v99 = vand.u32 %v49, 4294901760
    %100 = vmatpush1.msra.mxu0 %v99
    %101 = vmatprep.subr.mxu0 0.0
    %v102 = vand.u32 %v48, 4294901760
    %103 = vmatpush1.msra.mxu0 %v102
    %104 = vmatprep.subr.mxu0 0.0
    %v105 = vand.u32 %v47, 4294901760
    %106 = vmatpush1.msra.mxu0 %v105
    %107 = vmatprep.subr.mxu0 0.0
    %v108 = vand.u32 %v46, 4294901760
    %109 = vmatpush1.msra.mxu0 %v108
    %110 = vmatprep.subr.mxu0 0.0
    %111 = vmatpush2.msra.mxu0 0.0
    %112 = vmatprep.subr.mxu0 0.0
    %113 = vmatpush2.msra.mxu0 0.0
    %114 = vmatprep.subr.mxu0 0.0
    %115 = vmatpush2.msra.mxu0 0.0
    %116 = vmatprep.subr.mxu0 0.0
    %117 = vmatpush2.msra.mxu0 0.0
    %118 = vmatprep.subr.mxu0 0.0
    %119 = vmatpush2.msra.mxu0 0.0
    %120 = vmatprep.subr.mxu0 0.0
    %121 = vmatpush2.msra.mxu0 0.0
    %122 = vmatprep.subr.mxu0 0.0
    %123 = vmatpush2.msra.mxu0 0.0
    %124 = vmatprep.subr.mxu0 0.0
    %125 = vmatpush2.msra.mxu0 0.0
    %126 = vmatprep.subr.mxu0 0.0
    %127 = vmatpush2.msra.mxu0 0.0
    %128 = vmatprep.subr.mxu0 0.0
    %129 = vmatpush2.msra.mxu0 0.0
    %130 = vmatprep.subr.mxu0 0.0
    %131 = vmatpush2.msra.mxu0 0.0
    %132 = vmatprep.subr.mxu0 0.0
    %133 = vmatpush2.msra.mxu0 0.0
    %134 = vmatprep.subr.mxu0 0.0
    %135 = vmatpush2.msra.mxu0 0.0
    %136 = vmatprep.subr.mxu0 0.0
    %137 = vmatpush2.msra.mxu0 0.0
    %138 = vmatprep.subr.mxu0 0.0
    %139 = vmatpush2.msra.mxu0 0.0
    %140 = vmatprep.subr.mxu0 0.0
    %141 = vmatpush2.msra.mxu0 0.0
    %142 = vmatprep.mubr.f32.mxu0 0.0
    %v143 = vand.u32 %v40, 4294901760
    %v144 = vsub.f32 %v40, %v143
    %v145 = vand.u32 %v144, 4294901760
    %v146 = vsub.f32 %v144, %v145
    %v147 = vand.u32 %v146, 4294901760
    %148 = vmatmul.mubr.f32.gmra.mxu0 %v147
    %v149 = vpop.f32.mrf.mxu0
    %v150 = vadd.f32 0.0, %v149
    %v151 = vpop.f32.mrf.mxu0
    %152 = vmatprep.mubr.f32.mxu0 0.0
    %v153 = vand.u32 %v41, 4294901760
    %v154 = vsub.f32 %v41, %v153
    %v155 = vand.u32 %v154, 4294901760
    %v156 = vsub.f32 %v154, %v155
    %v157 = vand.u32 %v156, 4294901760
    %158 = vmatmul.mubr.f32.gmra.mxu0 %v157
    %v159 = vpop.f32.mrf.mxu0
    %v160 = vadd.f32 0.0, %v159
    %v161 = vpop.f32.mrf.mxu0
    %162 = vmatprep.mubr.f32.mxu0 0.0
    %v163 = vand.u32 %v42, 4294901760
    %v164 = vsub.f32 %v42, %v163
    %v165 = vand.u32 %v164, 4294901760
    %v166 = vsub.f32 %v164, %v165
    %v167 = vand.u32 %v166, 4294901760
    %168 = vmatmul.mubr.f32.gmra.mxu0 %v167
    %v169 = vpop.f32.mrf.mxu0
    %v170 = vadd.f32 0.0, %v169
    %v171 = vpop.f32.mrf.mxu0
    %172 = vmatprep.mubr.f32.mxu0 0.0
    %v173 = vand.u32 %v43, 4294901760
    %v174 = vsub.f32 %v43, %v173
    %v175 = vand.u32 %v174, 4294901760
    %v176 = vsub.f32 %v174, %v175
    %v177 = vand.u32 %v176, 4294901760
    %178 = vmatmul.mubr.f32.gmra.mxu0 %v177
    %v179 = vpop.f32.mrf.mxu0
    %v180 = vadd.f32 0.0, %v179
    %v181 = vpop.f32.mrf.mxu0
    %182 = vmatprep.mubr.f32.mxu0 0.0
    %v183 = vand.u32 %v44, 4294901760
    %v184 = vsub.f32 %v44, %v183
    %v185 = vand.u32 %v184, 4294901760
    %v186 = vsub.f32 %v184, %v185
    %v187 = vand.u32 %v186, 4294901760
    %188 = vmatmul.mubr.f32.gmra.mxu0 %v187
    %v189 = vpop.f32.mrf.mxu0
    %v190 = vadd.f32 0.0, %v189
    %v191 = vpop.f32.mrf.mxu0
    %192 = vmatprep.mubr.f32.mxu0 0.0
    %v193 = vand.u32 %v45, 4294901760
    %v194 = vsub.f32 %v45, %v193
    %v195 = vand.u32 %v194, 4294901760
    %v196 = vsub.f32 %v194, %v195
    %v197 = vand.u32 %v196, 4294901760
    %198 = vmatmul.mubr.f32.gmra.mxu0 %v197
    %v199 = vpop.f32.mrf.mxu0
    %v200 = vadd.f32 0.0, %v199
    %v201 = vpop.f32.mrf.mxu0
    %202 = vdwg.mxu0
    %203 = vmatprep.subr.mxu0 0.0
    %v204 = vand.u32 %v61, 4294901760
    %v205 = vsub.f32 %v61, %v204
    %v206 = vand.u32 %v205, 4294901760
    %v207 = vsub.f32 %v205, %v206
    %v208 = vand.u32 %v207, 4294901760
    %209 = vmatpush1.msra.mxu0 %v208
    %210 = vmatprep.subr.mxu0 0.0
    %v211 = vand.u32 %v60, 4294901760
    %v212 = vsub.f32 %v60, %v211
    %v213 = vand.u32 %v212, 4294901760
    %v214 = vsub.f32 %v212, %v213
    %v215 = vand.u32 %v214, 4294901760
    %216 = vmatpush1.msra.mxu0 %v215
    %217 = vmatprep.subr.mxu0 0.0
    %v218 = vand.u32 %v59, 4294901760
    %v219 = vsub.f32 %v59, %v218
    %v220 = vand.u32 %v219, 4294901760
    %v221 = vsub.f32 %v219, %v220
    %v222 = vand.u32 %v221, 4294901760
    %223 = vmatpush1.msra.mxu0 %v222
    %224 = vmatprep.subr.mxu0 0.0
    %v225 = vand.u32 %v58, 4294901760
    %v226 = vsub.f32 %v58, %v225
    %v227 = vand.u32 %v226, 4294901760
    %v228 = vsub.f32 %v226, %v227
    %v229 = vand.u32 %v228, 4294901760
    %230 = vmatpush1.msra.mxu0 %v229
    %231 = vmatprep.subr.mxu0 0.0
    %v232 = vand.u32 %v57, 4294901760
    %v233 = vsub.f32 %v57, %v232
    %v234 = vand.u32 %v233, 4294901760
    %v235 = vsub.f32 %v233, %v234
    %v236 = vand.u32 %v235, 4294901760
    %237 = vmatpush1.msra.mxu0 %v236
    %238 = vmatprep.subr.mxu0 0.0
    %v239 = vand.u32 %v56, 4294901760
    %v240 = vsub.f32 %v56, %v239
    %v241 = vand.u32 %v240, 4294901760
    %v242 = vsub.f32 %v240, %v241
    %v243 = vand.u32 %v242, 4294901760
    %244 = vmatpush1.msra.mxu0 %v243
    %245 = vmatprep.subr.mxu0 0.0
    %v246 = vand.u32 %v55, 4294901760
    %v247 = vsub.f32 %v55, %v246
    %v248 = vand.u32 %v247, 4294901760
    %v249 = vsub.f32 %v247, %v248
    %v250 = vand.u32 %v249, 4294901760
    %251 = vmatpush1.msra.mxu0 %v250
    %252 = vmatprep.subr.mxu0 0.0
    %v253 = vand.u32 %v54, 4294901760
    %v254 = vsub.f32 %v54, %v253
    %v255 = vand.u32 %v254, 4294901760
    %v256 = vsub.f32 %v254, %v255
    %v257 = vand.u32 %v256, 4294901760
    %258 = vmatpush1.msra.mxu0 %v257
    %259 = vmatprep.subr.mxu0 0.0
    %v260 = vand.u32 %v53, 4294901760
    %v261 = vsub.f32 %v53, %v260
    %v262 = vand.u32 %v261, 4294901760
    %v263 = vsub.f32 %v261, %v262
    %v264 = vand.u32 %v263, 4294901760
    %265 = vmatpush1.msra.mxu0 %v264
    %266 = vmatprep.subr.mxu0 0.0
    %v267 = vand.u32 %v52, 4294901760
    %v268 = vsub.f32 %v52, %v267
    %v269 = vand.u32 %v268, 4294901760
    %v270 = vsub.f32 %v268, %v269
    %v271 = vand.u32 %v270, 4294901760
    %272 = vmatpush1.msra.mxu0 %v271
    %273 = vmatprep.subr.mxu0 0.0
    %v274 = vand.u32 %v51, 4294901760
    %v275 = vsub.f32 %v51, %v274
    %v276 = vand.u32 %v275, 4294901760
    %v277 = vsub.f32 %v275, %v276
    %v278 = vand.u32 %v277, 4294901760
    %279 = vmatpush1.msra.mxu0 %v278
    %280 = vmatprep.subr.mxu0 0.0
    %v281 = vand.u32 %v50, 4294901760
    %v282 = vsub.f32 %v50, %v281
    %v283 = vand.u32 %v282, 4294901760
    %v284 = vsub.f32 %v282, %v283
    %v285 = vand.u32 %v284, 4294901760
    %286 = vmatpush1.msra.mxu0 %v285
    %287 = vmatprep.subr.mxu0 0.0
    %v288 = vand.u32 %v49, 4294901760
    %v289 = vsub.f32 %v49, %v288
    %v290 = vand.u32 %v289, 4294901760
    %v291 = vsub.f32 %v289, %v290
    %v292 = vand.u32 %v291, 4294901760
    %293 = vmatpush1.msra.mxu0 %v292
    %294 = vmatprep.subr.mxu0 0.0
    %v295 = vand.u32 %v48, 4294901760
    %v296 = vsub.f32 %v48, %v295
    %v297 = vand.u32 %v296, 4294901760
    %v298 = vsub.f32 %v296, %v297
    %v299 = vand.u32 %v298, 4294901760
    %300 = vmatpush1.msra.mxu0 %v299
    %301 = vmatprep.subr.mxu0 0.0
    %v302 = vand.u32 %v47, 4294901760
    %v303 = vsub.f32 %v47, %v302
    %v304 = vand.u32 %v303, 4294901760
    %v305 = vsub.f32 %v303, %v304
    %v306 = vand.u32 %v305, 4294901760
    %307 = vmatpush1.msra.mxu0 %v306
    %308 = vmatprep.subr.mxu0 0.0
    %v309 = vand.u32 %v46, 4294901760
    %v310 = vsub.f32 %v46, %v309
    %v311 = vand.u32 %v310, 4294901760
    %v312 = vsub.f32 %v310, %v311
    %v313 = vand.u32 %v312, 4294901760
    %314 = vmatpush1.msra.mxu0 %v313
    %315 = vmatprep.subr.mxu0 0.0
    %316 = vmatpush2.msra.mxu0 0.0
    %317 = vmatprep.subr.mxu0 0.0
    %318 = vmatpush2.msra.mxu0 0.0
    %319 = vmatprep.subr.mxu0 0.0
    %320 = vmatpush2.msra.mxu0 0.0
    %321 = vmatprep.subr.mxu0 0.0
    %322 = vmatpush2.msra.mxu0 0.0
    %323 = vmatprep.subr.mxu0 0.0
    %324 = vmatpush2.msra.mxu0 0.0
    %325 = vmatprep.subr.mxu0 0.0
    %326 = vmatpush2.msra.mxu0 0.0
    %327 = vmatprep.subr.mxu0 0.0
    %328 = vmatpush2.msra.mxu0 0.0
    %329 = vmatprep.subr.mxu0 0.0
    %330 = vmatpush2.msra.mxu0 0.0
    %331 = vmatprep.subr.mxu0 0.0
    %332 = vmatpush2.msra.mxu0 0.0
    %333 = vmatprep.subr.mxu0 0.0
    %334 = vmatpush2.msra.mxu0 0.0
    %335 = vmatprep.subr.mxu0 0.0
    %336 = vmatpush2.msra.mxu0 0.0
    %337 = vmatprep.subr.mxu0 0.0
    %338 = vmatpush2.msra.mxu0 0.0
    %339 = vmatprep.subr.mxu0 0.0
    %340 = vmatpush2.msra.mxu0 0.0
    %341 = vmatprep.subr.mxu0 0.0
    %342 = vmatpush2.msra.mxu0 0.0
    %343 = vmatprep.subr.mxu0 0.0
    %344 = vmatpush2.msra.mxu0 0.0
    %345 = vmatprep.subr.mxu0 0.0
    %346 = vmatpush2.msra.mxu0 0.0
    %347 = vmatprep.mubr.f32.mxu0 0.0
    %v348 = vand.u32 %v40, 4294901760
    %349 = vmatmul.mubr.f32.gmra.mxu0 %v348
    %v350 = vpop.f32.mrf.mxu0
    %v351 = vadd.f32 %v150, %v350
    %v352 = vpop.f32.mrf.mxu0
    %353 = vmatprep.mubr.f32.mxu0 0.0
    %v354 = vand.u32 %v41, 4294901760
    %355 = vmatmul.mubr.f32.gmra.mxu0 %v354
    %v356 = vpop.f32.mrf.mxu0
    %v357 = vadd.f32 %v160, %v356
    %v358 = vpop.f32.mrf.mxu0
    %359 = vmatprep.mubr.f32.mxu0 0.0
    %v360 = vand.u32 %v42, 4294901760
    %361 = vmatmul.mubr.f32.gmra.mxu0 %v360
    %v362 = vpop.f32.mrf.mxu0
    %v363 = vadd.f32 %v170, %v362
    %v364 = vpop.f32.mrf.mxu0
    %365 = vmatprep.mubr.f32.mxu0 0.0
    %v366 = vand.u32 %v43, 4294901760
    %367 = vmatmul.mubr.f32.gmra.mxu0 %v366
    %v368 = vpop.f32.mrf.mxu0
    %v369 = vadd.f32 %v180, %v368
    %v370 = vpop.f32.mrf.mxu0
    %371 = vmatprep.mubr.f32.mxu0 0.0
    %v372 = vand.u32 %v44, 4294901760
    %373 = vmatmul.mubr.f32.gmra.mxu0 %v372
    %v374 = vpop.f32.mrf.mxu0
    %v375 = vadd.f32 %v190, %v374
    %v376 = vpop.f32.mrf.mxu0
    %377 = vmatprep.mubr.f32.mxu0 0.0
    %v378 = vand.u32 %v45, 4294901760
    %379 = vmatmul.mubr.f32.gmra.mxu0 %v378
    %v380 = vpop.f32.mrf.mxu0
    %v381 = vadd.f32 %v200, %v380
    %v382 = vpop.f32.mrf.mxu0
    %383 = vdwg.mxu0
    %384 = vmatprep.subr.mxu0 0.0
    %v385 = vand.u32 %v61, 4294901760
    %v386 = vsub.f32 %v61, %v385
    %387 = vmatpush1.msra.mxu0 %v386
    %388 = vmatprep.subr.mxu0 0.0
    %v389 = vand.u32 %v60, 4294901760
    %v390 = vsub.f32 %v60, %v389
    %391 = vmatpush1.msra.mxu0 %v390
    %392 = vmatprep.subr.mxu0 0.0
    %v393 = vand.u32 %v59, 4294901760
    %v394 = vsub.f32 %v59, %v393
    %395 = vmatpush1.msra.mxu0 %v394
    %396 = vmatprep.subr.mxu0 0.0
    %v397 = vand.u32 %v58, 4294901760
    %v398 = vsub.f32 %v58, %v397
    %399 = vmatpush1.msra.mxu0 %v398
    %400 = vmatprep.subr.mxu0 0.0
    %v401 = vand.u32 %v57, 4294901760
    %v402 = vsub.f32 %v57, %v401
    %403 = vmatpush1.msra.mxu0 %v402
    %404 = vmatprep.subr.mxu0 0.0
    %v405 = vand.u32 %v56, 4294901760
    %v406 = vsub.f32 %v56, %v405
    %407 = vmatpush1.msra.mxu0 %v406
    %408 = vmatprep.subr.mxu0 0.0
    %v409 = vand.u32 %v55, 4294901760
    %v410 = vsub.f32 %v55, %v409
    %411 = vmatpush1.msra.mxu0 %v410
    %412 = vmatprep.subr.mxu0 0.0
    %v413 = vand.u32 %v54, 4294901760
    %v414 = vsub.f32 %v54, %v413
    %415 = vmatpush1.msra.mxu0 %v414
    %416 = vmatprep.subr.mxu0 0.0
    %v417 = vand.u32 %v53, 4294901760
    %v418 = vsub.f32 %v53, %v417
    %419 = vmatpush1.msra.mxu0 %v418
    %420 = vmatprep.subr.mxu0 0.0
    %v421 = vand.u32 %v52, 4294901760
    %v422 = vsub.f32 %v52, %v421
    %423 = vmatpush1.msra.mxu0 %v422
    %424 = vmatprep.subr.mxu0 0.0
    %v425 = vand.u32 %v51, 4294901760
    %v426 = vsub.f32 %v51, %v425
    %427 = vmatpush1.msra.mxu0 %v426
    %428 = vmatprep.subr.mxu0 0.0
    %v429 = vand.u32 %v50, 4294901760
    %v430 = vsub.f32 %v50, %v429
    %431 = vmatpush1.msra.mxu0 %v430
    %432 = vmatprep.subr.mxu0 0.0
    %v433 = vand.u32 %v49, 4294901760
    %v434 = vsub.f32 %v49, %v433
    %435 = vmatpush1.msra.mxu0 %v434
    %436 = vmatprep.subr.mxu0 0.0
    %v437 = vand.u32 %v48, 4294901760
    %v438 = vsub.f32 %v48, %v437
    %439 = vmatpush1.msra.mxu0 %v438
    %440 = vmatprep.subr.mxu0 0.0
    %v441 = vand.u32 %v47, 4294901760
    %v442 = vsub.f32 %v47, %v441
    %443 = vmatpush1.msra.mxu0 %v442
    %444 = vmatprep.subr.mxu0 0.0
    %v445 = vand.u32 %v46, 4294901760
    %v446 = vsub.f32 %v46, %v445
    %447 = vmatpush1.msra.mxu0 %v446
    %448 = vmatprep.subr.mxu0 0.0
    %449 = vmatpush2.msra.mxu0 0.0
    %450 = vmatprep.subr.mxu0 0.0
    %451 = vmatpush2.msra.mxu0 0.0
    %452 = vmatprep.subr.mxu0 0.0
    %453 = vmatpush2.msra.mxu0 0.0
    %454 = vmatprep.subr.mxu0 0.0
    %455 = vmatpush2.msra.mxu0 0.0
    %456 = vmatprep.subr.mxu0 0.0
    %457 = vmatpush2.msra.mxu0 0.0
    %458 = vmatprep.subr.mxu0 0.0
    %459 = vmatpush2.msra.mxu0 0.0
    %460 = vmatprep.subr.mxu0 0.0
    %461 = vmatpush2.msra.mxu0 0.0
    %462 = vmatprep.subr.mxu0 0.0
    %463 = vmatpush2.msra.mxu0 0.0
    %464 = vmatprep.subr.mxu0 0.0
    %465 = vmatpush2.msra.mxu0 0.0
    %466 = vmatprep.subr.mxu0 0.0
    %467 = vmatpush2.msra.mxu0 0.0
    %468 = vmatprep.subr.mxu0 0.0
    %469 = vmatpush2.msra.mxu0 0.0
    %470 = vmatprep.subr.mxu0 0.0
    %471 = vmatpush2.msra.mxu0 0.0
    %472 = vmatprep.subr.mxu0 0.0
    %473 = vmatpush2.msra.mxu0 0.0
    %474 = vmatprep.subr.mxu0 0.0
    %475 = vmatpush2.msra.mxu0 0.0
    %476 = vmatprep.subr.mxu0 0.0
    %477 = vmatpush2.msra.mxu0 0.0
    %478 = vmatprep.subr.mxu0 0.0
    %479 = vmatpush2.msra.mxu0 0.0
    %480 = vmatprep.mubr.f32.mxu0 0.0
    %v481 = vand.u32 %v40, 4294901760
    %v482 = vsub.f32 %v40, %v481
    %483 = vmatmul.mubr.f32.gmra.mxu0 %v482
    %v484 = vpop.f32.mrf.mxu0
    %v485 = vadd.f32 %v351, %v484
    %v486 = vpop.f32.mrf.mxu0
    %487 = vmatprep.mubr.f32.mxu0 0.0
    %v488 = vand.u32 %v41, 4294901760
    %v489 = vsub.f32 %v41, %v488
    %490 = vmatmul.mubr.f32.gmra.mxu0 %v489
    %v491 = vpop.f32.mrf.mxu0
    %v492 = vadd.f32 %v357, %v491
    %v493 = vpop.f32.mrf.mxu0
    %494 = vmatprep.mubr.f32.mxu0 0.0
    %v495 = vand.u32 %v42, 4294901760
    %v496 = vsub.f32 %v42, %v495
    %497 = vmatmul.mubr.f32.gmra.mxu0 %v496
    %v498 = vpop.f32.mrf.mxu0
    %v499 = vadd.f32 %v363, %v498
    %v500 = vpop.f32.mrf.mxu0
    %501 = vmatprep.mubr.f32.mxu0 0.0
    %v502 = vand.u32 %v43, 4294901760
    %v503 = vsub.f32 %v43, %v502
    %504 = vmatmul.mubr.f32.gmra.mxu0 %v503
    %v505 = vpop.f32.mrf.mxu0
    %v506 = vadd.f32 %v369, %v505
    %v507 = vpop.f32.mrf.mxu0
    %508 = vmatprep.mubr.f32.mxu0 0.0
    %v509 = vand.u32 %v44, 4294901760
    %v510 = vsub.f32 %v44, %v509
    %511 = vmatmul.mubr.f32.gmra.mxu0 %v510
    %v512 = vpop.f32.mrf.mxu0
    %v513 = vadd.f32 %v375, %v512
    %v514 = vpop.f32.mrf.mxu0
    %515 = vmatprep.mubr.f32.mxu0 0.0
    %v516 = vand.u32 %v45, 4294901760
    %v517 = vsub.f32 %v45, %v516
    %518 = vmatmul.mubr.f32.gmra.mxu0 %v517
    %v519 = vpop.f32.mrf.mxu0
    %v520 = vadd.f32 %v381, %v519
    %v521 = vpop.f32.mrf.mxu0
    %522 = vdwg.mxu0
    %523 = vmatprep.subr.mxu0 0.0
    %v524 = vand.u32 %v61, 4294901760
    %525 = vmatpush1.msra.mxu0 %v524
    %526 = vmatprep.subr.mxu0 0.0
    %v527 = vand.u32 %v60, 4294901760
    %528 = vmatpush1.msra.mxu0 %v527
    %529 = vmatprep.subr.mxu0 0.0
    %v530 = vand.u32 %v59, 4294901760
    %531 = vmatpush1.msra.mxu0 %v530
    %532 = vmatprep.subr.mxu0 0.0
    %v533 = vand.u32 %v58, 4294901760
    %534 = vmatpush1.msra.mxu0 %v533
    %535 = vmatprep.subr.mxu0 0.0
    %v536 = vand.u32 %v57, 4294901760
    %537 = vmatpush1.msra.mxu0 %v536
    %538 = vmatprep.subr.mxu0 0.0
    %v539 = vand.u32 %v56, 4294901760
    %540 = vmatpush1.msra.mxu0 %v539
    %541 = vmatprep.subr.mxu0 0.0
    %v542 = vand.u32 %v55, 4294901760
    %543 = vmatpush1.msra.mxu0 %v542
    %544 = vmatprep.subr.mxu0 0.0
    %v545 = vand.u32 %v54, 4294901760
    %546 = vmatpush1.msra.mxu0 %v545
    %547 = vmatprep.subr.mxu0 0.0
    %v548 = vand.u32 %v53, 4294901760
    %549 = vmatpush1.msra.mxu0 %v548
    %550 = vmatprep.subr.mxu0 0.0
    %v551 = vand.u32 %v52, 4294901760
    %552 = vmatpush1.msra.mxu0 %v551
    %553 = vmatprep.subr.mxu0 0.0
    %v554 = vand.u32 %v51, 4294901760
    %555 = vmatpush1.msra.mxu0 %v554
    %556 = vmatprep.subr.mxu0 0.0
    %v557 = vand.u32 %v50, 4294901760
    %558 = vmatpush1.msra.mxu0 %v557
    %559 = vmatprep.subr.mxu0 0.0
    %v560 = vand.u32 %v49, 4294901760
    %561 = vmatpush1.msra.mxu0 %v560
    %562 = vmatprep.subr.mxu0 0.0
    %v563 = vand.u32 %v48, 4294901760
    %564 = vmatpush1.msra.mxu0 %v563
    %565 = vmatprep.subr.mxu0 0.0
    %v566 = vand.u32 %v47, 4294901760
    %567 = vmatpush1.msra.mxu0 %v566
    %568 = vmatprep.subr.mxu0 0.0
    %v569 = vand.u32 %v46, 4294901760
    %570 = vmatpush1.msra.mxu0 %v569
    %571 = vmatprep.subr.mxu0 0.0
    %572 = vmatpush2.msra.mxu0 0.0
    %573 = vmatprep.subr.mxu0 0.0
    %574 = vmatpush2.msra.mxu0 0.0
    %575 = vmatprep.subr.mxu0 0.0
    %576 = vmatpush2.msra.mxu0 0.0
    %577 = vmatprep.subr.mxu0 0.0
    %578 = vmatpush2.msra.mxu0 0.0
    %579 = vmatprep.subr.mxu0 0.0
    %580 = vmatpush2.msra.mxu0 0.0
    %581 = vmatprep.subr.mxu0 0.0
    %582 = vmatpush2.msra.mxu0 0.0
    %583 = vmatprep.subr.mxu0 0.0
    %584 = vmatpush2.msra.mxu0 0.0
    %585 = vmatprep.subr.mxu0 0.0
    %586 = vmatpush2.msra.mxu0 0.0
    %587 = vmatprep.subr.mxu0 0.0
    %588 = vmatpush2.msra.mxu0 0.0
    %589 = vmatprep.subr.mxu0 0.0
    %590 = vmatpush2.msra.mxu0 0.0
    %591 = vmatprep.subr.mxu0 0.0
    %592 = vmatpush2.msra.mxu0 0.0
    %593 = vmatprep.subr.mxu0 0.0
    %594 = vmatpush2.msra.mxu0 0.0
    %595 = vmatprep.subr.mxu0 0.0
    %596 = vmatpush2.msra.mxu0 0.0
    %597 = vmatprep.subr.mxu0 0.0
    %598 = vmatpush2.msra.mxu0 0.0
    %599 = vmatprep.subr.mxu0 0.0
    %600 = vmatpush2.msra.mxu0 0.0
    %601 = vmatprep.subr.mxu0 0.0
    %602 = vmatpush2.msra.mxu0 0.0
    %603 = vmatprep.mubr.f32.mxu0 0.0
    %v604 = vand.u32 %v40, 4294901760
    %v605 = vsub.f32 %v40, %v604
    %v606 = vand.u32 %v605, 4294901760
    %607 = vmatmul.mubr.f32.gmra.mxu0 %v606
    %v608 = vpop.f32.mrf.mxu0
    %v609 = vadd.f32 %v485, %v608
    %v610 = vpop.f32.mrf.mxu0
    %611 = vmatprep.mubr.f32.mxu0 0.0
    %v612 = vand.u32 %v41, 4294901760
    %v613 = vsub.f32 %v41, %v612
    %v614 = vand.u32 %v613, 4294901760
    %615 = vmatmul.mubr.f32.gmra.mxu0 %v614
    %v616 = vpop.f32.mrf.mxu0
    %v617 = vadd.f32 %v492, %v616
    %v618 = vpop.f32.mrf.mxu0
    %619 = vmatprep.mubr.f32.mxu0 0.0
    %v620 = vand.u32 %v42, 4294901760
    %v621 = vsub.f32 %v42, %v620
    %v622 = vand.u32 %v621, 4294901760
    %623 = vmatmul.mubr.f32.gmra.mxu0 %v622
    %v624 = vpop.f32.mrf.mxu0
    %v625 = vadd.f32 %v499, %v624
    %v626 = vpop.f32.mrf.mxu0
    %627 = vmatprep.mubr.f32.mxu0 0.0
    %v628 = vand.u32 %v43, 4294901760
    %v629 = vsub.f32 %v43, %v628
    %v630 = vand.u32 %v629, 4294901760
    %631 = vmatmul.mubr.f32.gmra.mxu0 %v630
    %v632 = vpop.f32.mrf.mxu0
    %v633 = vadd.f32 %v506, %v632
    %v634 = vpop.f32.mrf.mxu0
    %635 = vmatprep.mubr.f32.mxu0 0.0
    %v636 = vand.u32 %v44, 4294901760
    %v637 = vsub.f32 %v44, %v636
    %v638 = vand.u32 %v637, 4294901760
    %639 = vmatmul.mubr.f32.gmra.mxu0 %v638
    %v640 = vpop.f32.mrf.mxu0
    %v641 = vadd.f32 %v513, %v640
    %v642 = vpop.f32.mrf.mxu0
    %643 = vmatprep.mubr.f32.mxu0 0.0
    %v644 = vand.u32 %v45, 4294901760
    %v645 = vsub.f32 %v45, %v644
    %v646 = vand.u32 %v645, 4294901760
    %647 = vmatmul.mubr.f32.gmra.mxu0 %v646
    %v648 = vpop.f32.mrf.mxu0
    %v649 = vadd.f32 %v520, %v648
    %v650 = vpop.f32.mrf.mxu0
    %651 = vdwg.mxu0
    %652 = vmatprep.subr.mxu0 0.0
    %v653 = vand.u32 %v61, 4294901760
    %v654 = vsub.f32 %v61, %v653
    %v655 = vand.u32 %v654, 4294901760
    %656 = vmatpush1.msra.mxu0 %v655
    %657 = vmatprep.subr.mxu0 0.0
    %v658 = vand.u32 %v60, 4294901760
    %v659 = vsub.f32 %v60, %v658
    %v660 = vand.u32 %v659, 4294901760
    %661 = vmatpush1.msra.mxu0 %v660
    %662 = vmatprep.subr.mxu0 0.0
    %v663 = vand.u32 %v59, 4294901760
    %v664 = vsub.f32 %v59, %v663
    %v665 = vand.u32 %v664, 4294901760
    %666 = vmatpush1.msra.mxu0 %v665
    %667 = vmatprep.subr.mxu0 0.0
    %v668 = vand.u32 %v58, 4294901760
    %v669 = vsub.f32 %v58, %v668
    %v670 = vand.u32 %v669, 4294901760
    %671 = vmatpush1.msra.mxu0 %v670
    %672 = vmatprep.subr.mxu0 0.0
    %v673 = vand.u32 %v57, 4294901760
    %v674 = vsub.f32 %v57, %v673
    %v675 = vand.u32 %v674, 4294901760
    %676 = vmatpush1.msra.mxu0 %v675
    %677 = vmatprep.subr.mxu0 0.0
    %v678 = vand.u32 %v56, 4294901760
    %v679 = vsub.f32 %v56, %v678
    %v680 = vand.u32 %v679, 4294901760
    %681 = vmatpush1.msra.mxu0 %v680
    %682 = vmatprep.subr.mxu0 0.0
    %v683 = vand.u32 %v55, 4294901760
    %v684 = vsub.f32 %v55, %v683
    %v685 = vand.u32 %v684, 4294901760
    %686 = vmatpush1.msra.mxu0 %v685
    %687 = vmatprep.subr.mxu0 0.0
    %v688 = vand.u32 %v54, 4294901760
    %v689 = vsub.f32 %v54, %v688
    %v690 = vand.u32 %v689, 4294901760
    %691 = vmatpush1.msra.mxu0 %v690
    %692 = vmatprep.subr.mxu0 0.0
    %v693 = vand.u32 %v53, 4294901760
    %v694 = vsub.f32 %v53, %v693
    %v695 = vand.u32 %v694, 4294901760
    %696 = vmatpush1.msra.mxu0 %v695
    %697 = vmatprep.subr.mxu0 0.0
    %v698 = vand.u32 %v52, 4294901760
    %v699 = vsub.f32 %v52, %v698
    %v700 = vand.u32 %v699, 4294901760
    %701 = vmatpush1.msra.mxu0 %v700
    %702 = vmatprep.subr.mxu0 0.0
    %v703 = vand.u32 %v51, 4294901760
    %v704 = vsub.f32 %v51, %v703
    %v705 = vand.u32 %v704, 4294901760
    %706 = vmatpush1.msra.mxu0 %v705
    %707 = vmatprep.subr.mxu0 0.0
    %v708 = vand.u32 %v50, 4294901760
    %v709 = vsub.f32 %v50, %v708
    %v710 = vand.u32 %v709, 4294901760
    %711 = vmatpush1.msra.mxu0 %v710
    %712 = vmatprep.subr.mxu0 0.0
    %v713 = vand.u32 %v49, 4294901760
    %v714 = vsub.f32 %v49, %v713
    %v715 = vand.u32 %v714, 4294901760
    %716 = vmatpush1.msra.mxu0 %v715
    %717 = vmatprep.subr.mxu0 0.0
    %v718 = vand.u32 %v48, 4294901760
    %v719 = vsub.f32 %v48, %v718
    %v720 = vand.u32 %v719, 4294901760
    %721 = vmatpush1.msra.mxu0 %v720
    %722 = vmatprep.subr.mxu0 0.0
    %v723 = vand.u32 %v47, 4294901760
    %v724 = vsub.f32 %v47, %v723
    %v725 = vand.u32 %v724, 4294901760
    %726 = vmatpush1.msra.mxu0 %v725
    %727 = vmatprep.subr.mxu0 0.0
    %v728 = vand.u32 %v46, 4294901760
    %v729 = vsub.f32 %v46, %v728
    %v730 = vand.u32 %v729, 4294901760
    %731 = vmatpush1.msra.mxu0 %v730
    %732 = vmatprep.subr.mxu0 0.0
    %733 = vmatpush2.msra.mxu0 0.0
    %734 = vmatprep.subr.mxu0 0.0
    %735 = vmatpush2.msra.mxu0 0.0
    %736 = vmatprep.subr.mxu0 0.0
    %737 = vmatpush2.msra.mxu0 0.0
    %738 = vmatprep.subr.mxu0 0.0
    %739 = vmatpush2.msra.mxu0 0.0
    %740 = vmatprep.subr.mxu0 0.0
    %741 = vmatpush2.msra.mxu0 0.0
    %742 = vmatprep.subr.mxu0 0.0
    %743 = vmatpush2.msra.mxu0 0.0
    %744 = vmatprep.subr.mxu0 0.0
    %745 = vmatpush2.msra.mxu0 0.0
    %746 = vmatprep.subr.mxu0 0.0
    %747 = vmatpush2.msra.mxu0 0.0
    %748 = vmatprep.subr.mxu0 0.0
    %749 = vmatpush2.msra.mxu0 0.0
    %750 = vmatprep.subr.mxu0 0.0
    %751 = vmatpush2.msra.mxu0 0.0
    %752 = vmatprep.subr.mxu0 0.0
    %753 = vmatpush2.msra.mxu0 0.0
    %754 = vmatprep.subr.mxu0 0.0
    %755 = vmatpush2.msra.mxu0 0.0
    %756 = vmatprep.subr.mxu0 0.0
    %757 = vmatpush2.msra.mxu0 0.0
    %758 = vmatprep.subr.mxu0 0.0
    %759 = vmatpush2.msra.mxu0 0.0
    %760 = vmatprep.subr.mxu0 0.0
    %761 = vmatpush2.msra.mxu0 0.0
    %762 = vmatprep.subr.mxu0 0.0
    %763 = vmatpush2.msra.mxu0 0.0
    %764 = vmatprep.mubr.f32.mxu0 0.0
    %v765 = vand.u32 %v40, 4294901760
    %766 = vmatmul.mubr.f32.gmra.mxu0 %v765
    %v767 = vpop.f32.mrf.mxu0
    %v768 = vadd.f32 %v609, %v767
    %v769 = vpop.f32.mrf.mxu0
    %770 = vmatprep.mubr.f32.mxu0 0.0
    %v771 = vand.u32 %v41, 4294901760
    %772 = vmatmul.mubr.f32.gmra.mxu0 %v771
    %v773 = vpop.f32.mrf.mxu0
    %v774 = vadd.f32 %v617, %v773
    %v775 = vpop.f32.mrf.mxu0
    %776 = vmatprep.mubr.f32.mxu0 0.0
    %v777 = vand.u32 %v42, 4294901760
    %778 = vmatmul.mubr.f32.gmra.mxu0 %v777
    %v779 = vpop.f32.mrf.mxu0
    %v780 = vadd.f32 %v625, %v779
    %v781 = vpop.f32.mrf.mxu0
    %782 = vmatprep.mubr.f32.mxu0 0.0
    %v783 = vand.u32 %v43, 4294901760
    %784 = vmatmul.mubr.f32.gmra.mxu0 %v783
    %v785 = vpop.f32.mrf.mxu0
    %v786 = vadd.f32 %v633, %v785
    %v787 = vpop.f32.mrf.mxu0
    %788 = vmatprep.mubr.f32.mxu0 0.0
    %v789 = vand.u32 %v44, 4294901760
    %790 = vmatmul.mubr.f32.gmra.mxu0 %v789
    %v791 = vpop.f32.mrf.mxu0
    %v792 = vadd.f32 %v641, %v791
    %v793 = vpop.f32.mrf.mxu0
    %794 = vmatprep.mubr.f32.mxu0 0.0
    %v795 = vand.u32 %v45, 4294901760
    %796 = vmatmul.mubr.f32.gmra.mxu0 %v795
    %v797 = vpop.f32.mrf.mxu0
    %v798 = vadd.f32 %v649, %v797
    %v799 = vpop.f32.mrf.mxu0
    %800 = vdwg.mxu0
    %801 = vmatprep.subr.mxu0 0.0
    %v802 = vand.u32 %v61, 4294901760
    %803 = vmatpush1.msra.mxu0 %v802
    %804 = vmatprep.subr.mxu0 0.0
    %v805 = vand.u32 %v60, 4294901760
    %806 = vmatpush1.msra.mxu0 %v805
    %807 = vmatprep.subr.mxu0 0.0
    %v808 = vand.u32 %v59, 4294901760
    %809 = vmatpush1.msra.mxu0 %v808
    %810 = vmatprep.subr.mxu0 0.0
    %v811 = vand.u32 %v58, 4294901760
    %812 = vmatpush1.msra.mxu0 %v811
    %813 = vmatprep.subr.mxu0 0.0
    %v814 = vand.u32 %v57, 4294901760
    %815 = vmatpush1.msra.mxu0 %v814
    %816 = vmatprep.subr.mxu0 0.0
    %v817 = vand.u32 %v56, 4294901760
    %818 = vmatpush1.msra.mxu0 %v817
    %819 = vmatprep.subr.mxu0 0.0
    %v820 = vand.u32 %v55, 4294901760
    %821 = vmatpush1.msra.mxu0 %v820
    %822 = vmatprep.subr.mxu0 0.0
    %v823 = vand.u32 %v54, 4294901760
    %824 = vmatpush1.msra.mxu0 %v823
    %825 = vmatprep.subr.mxu0 0.0
    %v826 = vand.u32 %v53, 4294901760
    %827 = vmatpush1.msra.mxu0 %v826
    %828 = vmatprep.subr.mxu0 0.0
    %v829 = vand.u32 %v52, 4294901760
    %830 = vmatpush1.msra.mxu0 %v829
    %831 = vmatprep.subr.mxu0 0.0
    %v832 = vand.u32 %v51, 4294901760
    %833 = vmatpush1.msra.mxu0 %v832
    %834 = vmatprep.subr.mxu0 0.0
    %v835 = vand.u32 %v50, 4294901760
    %836 = vmatpush1.msra.mxu0 %v835
    %837 = vmatprep.subr.mxu0 0.0
    %v838 = vand.u32 %v49, 4294901760
    %839 = vmatpush1.msra.mxu0 %v838
    %840 = vmatprep.subr.mxu0 0.0
    %v841 = vand.u32 %v48, 4294901760
    %842 = vmatpush1.msra.mxu0 %v841
    %843 = vmatprep.subr.mxu0 0.0
    %v844 = vand.u32 %v47, 4294901760
    %845 = vmatpush1.msra.mxu0 %v844
    %846 = vmatprep.subr.mxu0 0.0
    %v847 = vand.u32 %v46, 4294901760
    %848 = vmatpush1.msra.mxu0 %v847
    %849 = vmatprep.subr.mxu0 0.0
    %850 = vmatpush2.msra.mxu0 0.0
    %851 = vmatprep.subr.mxu0 0.0
    %852 = vmatpush2.msra.mxu0 0.0
    %853 = vmatprep.subr.mxu0 0.0
    %854 = vmatpush2.msra.mxu0 0.0
    %855 = vmatprep.subr.mxu0 0.0
    %856 = vmatpush2.msra.mxu0 0.0
    %857 = vmatprep.subr.mxu0 0.0
    %858 = vmatpush2.msra.mxu0 0.0
    %859 = vmatprep.subr.mxu0 0.0
    %860 = vmatpush2.msra.mxu0 0.0
    %861 = vmatprep.subr.mxu0 0.0
    %862 = vmatpush2.msra.mxu0 0.0
    %863 = vmatprep.subr.mxu0 0.0
    %864 = vmatpush2.msra.mxu0 0.0
    %865 = vmatprep.subr.mxu0 0.0
    %866 = vmatpush2.msra.mxu0 0.0
    %867 = vmatprep.subr.mxu0 0.0
    %868 = vmatpush2.msra.mxu0 0.0
    %869 = vmatprep.subr.mxu0 0.0
    %870 = vmatpush2.msra.mxu0 0.0
    %871 = vmatprep.subr.mxu0 0.0
    %872 = vmatpush2.msra.mxu0 0.0
    %873 = vmatprep.subr.mxu0 0.0
    %874 = vmatpush2.msra.mxu0 0.0
    %875 = vmatprep.subr.mxu0 0.0
    %876 = vmatpush2.msra.mxu0 0.0
    %877 = vmatprep.subr.mxu0 0.0
    %878 = vmatpush2.msra.mxu0 0.0
    %879 = vmatprep.subr.mxu0 0.0
    %880 = vmatpush2.msra.mxu0 0.0
    %881 = vmatprep.mubr.f32.mxu0 0.0
    %v882 = vand.u32 %v40, 4294901760
    %883 = vmatmul.mubr.f32.gmra.mxu0 %v882
    %v884 = vpop.f32.mrf.mxu0
    %v885 = vadd.f32 %v768, %v884
    %v886 = vpop.f32.mrf.mxu0
    %887 = vmatprep.mubr.f32.mxu0 0.0
    %v888 = vand.u32 %v41, 4294901760
    %889 = vmatmul.mubr.f32.gmra.mxu0 %v888
    %v890 = vpop.f32.mrf.mxu0
    %v891 = vadd.f32 %v774, %v890
    %v892 = vpop.f32.mrf.mxu0
    %893 = vmatprep.mubr.f32.mxu0 0.0
    %v894 = vand.u32 %v42, 4294901760
    %895 = vmatmul.mubr.f32.gmra.mxu0 %v894
    %v896 = vpop.f32.mrf.mxu0
    %v897 = vadd.f32 %v780, %v896
    %v898 = vpop.f32.mrf.mxu0
    %899 = vmatprep.mubr.f32.mxu0 0.0
    %v900 = vand.u32 %v43, 4294901760
    %901 = vmatmul.mubr.f32.gmra.mxu0 %v900
    %v902 = vpop.f32.mrf.mxu0
    %v903 = vadd.f32 %v786, %v902
    %v904 = vpop.f32.mrf.mxu0
    %905 = vmatprep.mubr.f32.mxu0 0.0
    %v906 = vand.u32 %v44, 4294901760
    %907 = vmatmul.mubr.f32.gmra.mxu0 %v906
    %v908 = vpop.f32.mrf.mxu0
    %v909 = vadd.f32 %v792, %v908
    %v910 = vpop.f32.mrf.mxu0
    %911 = vmatprep.mubr.f32.mxu0 0.0
    %v912 = vand.u32 %v45, 4294901760
    %913 = vmatmul.mubr.f32.gmra.mxu0 %v912
    %v914 = vpop.f32.mrf.mxu0
    %v915 = vadd.f32 %v798, %v914
    %v916 = vpop.f32.mrf.mxu0
    %917 = vdwg.mxu0
    %918 = vst [vmem:[#allocation7] sm:$0xff] %v885
    %919 = vst [vmem:[#allocation7 + $0x8] sm:$0xff] %v891
    %920 = vst [vmem:[#allocation7 + $0x10] sm:$0xff] %v897
    %921 = vst [vmem:[#allocation7 + $0x18] sm:$0xff] %v903
    %922 = vst [vmem:[#allocation7 + $0x20] sm:$0xff] %v909
    %923 = vst [vmem:[#allocation7 + $0x28] sm:$0xff] %v915
    // Predicated region
    $region18: #{tpu_custom_call.1} parent=1 // pred_check
      _
    $region19: #{tpu_custom_call.1} parent=1 // pred_check_branch
      %925 = sbr.rel (0) target = $region21
    $region20: #{tpu_custom_call.1} parent=1 // pred_region
      %s927 = ssub.s32 768, 768
      %928 = vsyncadd [#allocation4], %s927
      %s929 = sshll.u32 [#allocation7], 4
      %s930 = int_to_ptr.vmem [resolvable:$true] %s929
      %935 = dma.vmem_to_hbm [thread:$0]  %s930, 768, %s2, [#allocation4], 128, 128, 8
    $region21: #{tpu_custom_call.1} parent=1 // pred_fallthru
      _
    // Predicated region
    $region22: #{tpu_custom_call.1} parent=1 // pred_check
      _
    $region23: #{tpu_custom_call.1} parent=1 // pred_check_branch
      %937 = sbr.rel (0) target = $region25
    $region24: #{tpu_custom_call.1} parent=1 // pred_region
      %938 = dma.done [#allocation4], 768
    $region25: #{tpu_custom_call.1} parent=1 // pred_fallthru
      _
    %939 = vsyncpa [#allocation3], 1
    %940 = vsyncpa [#allocation6], 1
    %941 = vsyncpa [#allocation4], 1

// kernel: tpu_custom_call.1
$region0: #{tpu_custom_call.1}
  #allocation0 [shape = 'u32[]', space=smem, size = 0x4, offset = 0x4, fixed_abs, tag = 'smem constant byte address 0x4 - core index']
  #allocation1 [shape = 'u32[144,128]{1,0:T(1,128)}', space=vmem, size = 0x12000, scoped, tag = 'internal scratch']
  %s0 = inlined_call_operand.hbm [shape: f32[48,128], index: 0, kind: input, shape index: {}]
  %s1 = inlined_call_operand.hbm [shape: f32[128,128], index: 1, kind: input, shape index: {}]
  %s2 = inlined_call_operand.hbm [shape: f32[48,128], index: 2, kind: output, shape index: {}]
  %s3 = sld [smem:[#allocation0]]
  $region26: #{tpu_custom_call.1} parent=0
    _
  %s5 = ssub.s32 1, %s3
  %s6 = scalar_select 0, %s5, %s3
  $region1: #{tpu_custom_call.1} parent=0
    #allocation2 [shape = 'u8[24576]{0}', space=vmem, size = 0x6000, scoped, tag = 'input window, operand 0, single buffered']
    #allocation3 [shape = 's32[1]{0}', space=sflag, size = 0x4, scoped, tag = 'scoped memory for tpu_custom_call.1']
    #allocation4 [shape = 's32[1]{0}', space=sflag, size = 0x4, scoped, tag = 'scoped memory for tpu_custom_call.1']
    #allocation5 [shape = 'u8[65536]{0}', space=vmem, size = 0x10000, scoped, tag = 'input window, operand 1, single buffered']
    #allocation6 [shape = 's32[1]{0}', space=sflag, size = 0x4, scoped, tag = 'scoped memory for tpu_custom_call.1']
    #allocation7 [shape = 'u8[24576]{0}', space=vmem, size = 0x6000, scoped, tag = 'output window, operand 0, single buffered']
    %7 = vsyncpa [#allocation3], 0
    %8 = vsyncpa [#allocation6], 0
    %9 = vsyncpa [#allocation4], 0
    // Predicated region
    $region2: #{tpu_custom_call.1} parent=1 // pred_check
      _
    $region3: #{tpu_custom_call.1} parent=1 // pred_check_branch
      %11 = sbr.rel (0) target = $region5
    $region4: #{tpu_custom_call.1} parent=1 // pred_region
      %s13 = ssub.s32 768, 768
      %14 = vsyncadd [#allocation3], %s13
      %s15 = sshll.u32 [#allocation2], 4
      %s16 = int_to_ptr.vmem [resolvable:$true] %s15
      %21 = dma.hbm_to_vmem [thread:$0]  %s0, 768, %s16, [#allocation3], 128, 128, 8
    $region5: #{tpu_custom_call.1} parent=1 // pred_fallthru
      _
    // Predicated region
    $region6: #{tpu_custom_call.1} parent=1 // pred_check
      _
    $region7: #{tpu_custom_call.1} parent=1 // pred_check_branch
      %23 = sbr.rel (0) target = $region9
    $region8: #{tpu_custom_call.1} parent=1 // pred_region
      %s25 = ssub.s32 2048, 2048
      %26 = vsyncadd [#allocation6], %s25
      %s27 = sshll.u32 [#allocation5], 4
      %s28 = int_to_ptr.vmem [resolvable:$true] %s27
      %33 = dma.hbm_to_vmem [thread:$0]  %s1, 2048, %s28, [#allocation6], 128, 128, 8
    $region9: #{tpu_custom_call.1} parent=1 // pred_fallthru
      _
    // Predicated region
    $region10: #{tpu_custom_call.1} parent=1 // pred_check
      _
    $region11: #{tpu_custom_call.1} parent=1 // pred_check_branch
      %35 = sbr.rel (0) target = $region13
    $region12: #{tpu_custom_call.1} parent=1 // pred_region
      %36 = dma.done [#allocation3], 768
    $region13: #{tpu_custom_call.1} parent=1 // pred_fallthru
      _
    // Predicated region
    $region14: #{tpu_custom_call.1} parent=1 // pred_check
      _
    $region15: #{tpu_custom_call.1} parent=1 // pred_check_branch
      %38 = sbr.rel (0) target = $region17
    $region16: #{tpu_custom_call.1} parent=1 // pred_region
      %39 = dma.done [#allocation6], 2048
    $region17: #{tpu_custom_call.1} parent=1 // pred_fallthru
      _
    %v40 = vld [vmem:[#allocation2] sm:$0xff]
    %v41 = vld [vmem:[#allocation2 + $0x8] sm:$0xff]
    %v42 = vld [vmem:[#allocation2 + $0x10] sm:$0xff]
    %v43 = vld [vmem:[#allocation2 + $0x18] sm:$0xff]
    %v44 = vld [vmem:[#allocation2 + $0x20] sm:$0xff]
    %v45 = vld [vmem:[#allocation2 + $0x28] sm:$0xff]
    %v46 = vld [vmem:[#allocation5] sm:$0xff]
    %v47 = vld [vmem:[#allocation5 + $0x8] sm:$0xff]
    %v48 = vld [vmem:[#allocation5 + $0x10] sm:$0xff]
    %v49 = vld [vmem:[#allocation5 + $0x18] sm:$0xff]
    %v50 = vld [vmem:[#allocation5 + $0x20] sm:$0xff]
    %v51 = vld [vmem:[#allocation5 + $0x28] sm:$0xff]
    %v52 = vld [vmem:[#allocation5 + $0x30] sm:$0xff]
    %v53 = vld [vmem:[#allocation5 + $0x38] sm:$0xff]
    %v54 = vld [vmem:[#allocation5 + $0x40] sm:$0xff]
    %v55 = vld [vmem:[#allocation5 + $0x48] sm:$0xff]
    %v56 = vld [vmem:[#allocation5 + $0x50] sm:$0xff]
    %v57 = vld [vmem:[#allocation5 + $0x58] sm:$0xff]
    %v58 = vld [vmem:[#allocation5 + $0x60] sm:$0xff]
    %v59 = vld [vmem:[#allocation5 + $0x68] sm:$0xff]
    %v60 = vld [vmem:[#allocation5 + $0x70] sm:$0xff]
    %v61 = vld [vmem:[#allocation5 + $0x78] sm:$0xff]
    %62 = vmatprep.subr.mxu0 0.0
    %v63 = vand.u32 %v61, 4294901760
    %64 = vmatpush1.msra.mxu0 %v63
    %65 = vmatprep.subr.mxu0 0.0
    %v66 = vand.u32 %v60, 4294901760
    %67 = vmatpush1.msra.mxu0 %v66
    %68 = vmatprep.subr.mxu0 0.0
    %v69 = vand.u32 %v59, 4294901760
    %70 = vmatpush1.msra.mxu0 %v69
    %71 = vmatprep.subr.mxu0 0.0
    %v72 = vand.u32 %v58, 4294901760
    %73 = vmatpush1.msra.mxu0 %v72
    %74 = vmatprep.subr.mxu0 0.0
    %v75 = vand.u32 %v57, 4294901760
    %76 = vmatpush1.msra.mxu0 %v75
    %77 = vmatprep.subr.mxu0 0.0
    %v78 = vand.u32 %v56, 4294901760
    %79 = vmatpush1.msra.mxu0 %v78
    %80 = vmatprep.subr.mxu0 0.0
    %v81 = vand.u32 %v55, 4294901760
    %82 = vmatpush1.msra.mxu0 %v81
    %83 = vmatprep.subr.mxu0 0.0
    %v84 = vand.u32 %v54, 4294901760
    %85 = vmatpush1.msra.mxu0 %v84
    %86 = vmatprep.subr.mxu0 0.0
    %v87 = vand.u32 %v53, 4294901760
    %88 = vmatpush1.msra.mxu0 %v87
    %89 = vmatprep.subr.mxu0 0.0
    %v90 = vand.u32 %v52, 4294901760
    %91 = vmatpush1.msra.mxu0 %v90
    %92 = vmatprep.subr.mxu0 0.0
    %v93 = vand.u32 %v51, 4294901760
    %94 = vmatpush1.msra.mxu0 %v93
    %95 = vmatprep.subr.mxu0 0.0
    %v96 = vand.u32 %v50, 4294901760
    %97 = vmatpush1.msra.mxu0 %v96
    %98 = vmatprep.subr.mxu0 0.0
    %v99 = vand.u32 %v49, 4294901760
    %100 = vmatpush1.msra.mxu0 %v99
    %101 = vmatprep.subr.mxu0 0.0
    %v102 = vand.u32 %v48, 4294901760
    %103 = vmatpush1.msra.mxu0 %v102
    %104 = vmatprep.subr.mxu0 0.0
    %v105 = vand.u32 %v47, 4294901760
    %106 = vmatpush1.msra.mxu0 %v105
    %107 = vmatprep.subr.mxu0 0.0
    %v108 = vand.u32 %v46, 4294901760
    %109 = vmatpush1.msra.mxu0 %v108
    %110 = vmatprep.subr.mxu0 0.0
    %111 = vmatpush2.msra.mxu0 0.0
    %112 = vmatprep.subr.mxu0 0.0
    %113 = vmatpush2.msra.mxu0 0.0
    %114 = vmatprep.subr.mxu0 0.0
    %115 = vmatpush2.msra.mxu0 0.0
    %116 = vmatprep.subr.mxu0 0.0
    %117 = vmatpush2.msra.mxu0 0.0
    %118 = vmatprep.subr.mxu0 0.0
    %119 = vmatpush2.msra.mxu0 0.0
    %120 = vmatprep.subr.mxu0 0.0
    %121 = vmatpush2.msra.mxu0 0.0
    %122 = vmatprep.subr.mxu0 0.0
    %123 = vmatpush2.msra.mxu0 0.0
    %124 = vmatprep.subr.mxu0 0.0
    %125 = vmatpush2.msra.mxu0 0.0
    %126 = vmatprep.subr.mxu0 0.0
    %127 = vmatpush2.msra.mxu0 0.0
    %128 = vmatprep.subr.mxu0 0.0
    %129 = vmatpush2.msra.mxu0 0.0
    %130 = vmatprep.subr.mxu0 0.0
    %131 = vmatpush2.msra.mxu0 0.0
    %132 = vmatprep.subr.mxu0 0.0
    %133 = vmatpush2.msra.mxu0 0.0
    %134 = vmatprep.subr.mxu0 0.0
    %135 = vmatpush2.msra.mxu0 0.0
    %136 = vmatprep.subr.mxu0 0.0
    %137 = vmatpush2.msra.mxu0 0.0
    %138 = vmatprep.subr.mxu0 0.0
    %139 = vmatpush2.msra.mxu0 0.0
    %140 = vmatprep.subr.mxu0 0.0
    %141 = vmatpush2.msra.mxu0 0.0
    %142 = vmatprep.mubr.f32.mxu0 0.0
    %v143 = vand.u32 %v40, 4294901760
    %v144 = vsub.f32 %v40, %v143
    %v145 = vand.u32 %v144, 4294901760
    %v146 = vsub.f32 %v144, %v145
    %v147 = vand.u32 %v146, 4294901760
    %148 = vmatmul.mubr.f32.gmra.mxu0 %v147
    %v149 = vpop.f32.mrf.mxu0
    %v150 = vadd.f32 0.0, %v149
    %v151 = vpop.f32.mrf.mxu0
    %152 = vmatprep.mubr.f32.mxu0 0.0
    %v153 = vand.u32 %v41, 4294901760
    %v154 = vsub.f32 %v41, %v153
    %v155 = vand.u32 %v154, 4294901760
    %v156 = vsub.f32 %v154, %v155
    %v157 = vand.u32 %v156, 4294901760
    %158 = vmatmul.mubr.f32.gmra.mxu0 %v157
    %v159 = vpop.f32.mrf.mxu0
    %v160 = vadd.f32 0.0, %v159
    %v161 = vpop.f32.mrf.mxu0
    %162 = vmatprep.mubr.f32.mxu0 0.0
    %v163 = vand.u32 %v42, 4294901760
    %v164 = vsub.f32 %v42, %v163
    %v165 = vand.u32 %v164, 4294901760
    %v166 = vsub.f32 %v164, %v165
    %v167 = vand.u32 %v166, 4294901760
    %168 = vmatmul.mubr.f32.gmra.mxu0 %v167
    %v169 = vpop.f32.mrf.mxu0
    %v170 = vadd.f32 0.0, %v169
    %v171 = vpop.f32.mrf.mxu0
    %172 = vmatprep.mubr.f32.mxu0 0.0
    %v173 = vand.u32 %v43, 4294901760
    %v174 = vsub.f32 %v43, %v173
    %v175 = vand.u32 %v174, 4294901760
    %v176 = vsub.f32 %v174, %v175
    %v177 = vand.u32 %v176, 4294901760
    %178 = vmatmul.mubr.f32.gmra.mxu0 %v177
    %v179 = vpop.f32.mrf.mxu0
    %v180 = vadd.f32 0.0, %v179
    %v181 = vpop.f32.mrf.mxu0
    %182 = vmatprep.mubr.f32.mxu0 0.0
    %v183 = vand.u32 %v44, 4294901760
    %v184 = vsub.f32 %v44, %v183
    %v185 = vand.u32 %v184, 4294901760
    %v186 = vsub.f32 %v184, %v185
    %v187 = vand.u32 %v186, 4294901760
    %188 = vmatmul.mubr.f32.gmra.mxu0 %v187
    %v189 = vpop.f32.mrf.mxu0
    %v190 = vadd.f32 0.0, %v189
    %v191 = vpop.f32.mrf.mxu0
    %192 = vmatprep.mubr.f32.mxu0 0.0
    %v193 = vand.u32 %v45, 4294901760
    %v194 = vsub.f32 %v45, %v193
    %v195 = vand.u32 %v194, 4294901760
    %v196 = vsub.f32 %v194, %v195
    %v197 = vand.u32 %v196, 4294901760
    %198 = vmatmul.mubr.f32.gmra.mxu0 %v197
    %v199 = vpop.f32.mrf.mxu0
    %v200 = vadd.f32 0.0, %v199
    %v201 = vpop.f32.mrf.mxu0
    %202 = vdwg.mxu0
    %203 = vmatprep.subr.mxu0 0.0
    %v204 = vand.u32 %v61, 4294901760
    %v205 = vsub.f32 %v61, %v204
    %v206 = vand.u32 %v205, 4294901760
    %v207 = vsub.f32 %v205, %v206
    %v208 = vand.u32 %v207, 4294901760
    %209 = vmatpush1.msra.mxu0 %v208
    %210 = vmatprep.subr.mxu0 0.0
    %v211 = vand.u32 %v60, 4294901760
    %v212 = vsub.f32 %v60, %v211
    %v213 = vand.u32 %v212, 4294901760
    %v214 = vsub.f32 %v212, %v213
    %v215 = vand.u32 %v214, 4294901760
    %216 = vmatpush1.msra.mxu0 %v215
    %217 = vmatprep.subr.mxu0 0.0
    %v218 = vand.u32 %v59, 4294901760
    %v219 = vsub.f32 %v59, %v218
    %v220 = vand.u32 %v219, 4294901760
    %v221 = vsub.f32 %v219, %v220
    %v222 = vand.u32 %v221, 4294901760
    %223 = vmatpush1.msra.mxu0 %v222
    %224 = vmatprep.subr.mxu0 0.0
    %v225 = vand.u32 %v58, 4294901760
    %v226 = vsub.f32 %v58, %v225
    %v227 = vand.u32 %v226, 4294901760
    %v228 = vsub.f32 %v226, %v227
    %v229 = vand.u32 %v228, 4294901760
    %230 = vmatpush1.msra.mxu0 %v229
    %231 = vmatprep.subr.mxu0 0.0
    %v232 = vand.u32 %v57, 4294901760
    %v233 = vsub.f32 %v57, %v232
    %v234 = vand.u32 %v233, 4294901760
    %v235 = vsub.f32 %v233, %v234
    %v236 = vand.u32 %v235, 4294901760
    %237 = vmatpush1.msra.mxu0 %v236
    %238 = vmatprep.subr.mxu0 0.0
    %v239 = vand.u32 %v56, 4294901760
    %v240 = vsub.f32 %v56, %v239
    %v241 = vand.u32 %v240, 4294901760
    %v242 = vsub.f32 %v240, %v241
    %v243 = vand.u32 %v242, 4294901760
    %244 = vmatpush1.msra.mxu0 %v243
    %245 = vmatprep.subr.mxu0 0.0
    %v246 = vand.u32 %v55, 4294901760
    %v247 = vsub.f32 %v55, %v246
    %v248 = vand.u32 %v247, 4294901760
    %v249 = vsub.f32 %v247, %v248
    %v250 = vand.u32 %v249, 4294901760
    %251 = vmatpush1.msra.mxu0 %v250
    %252 = vmatprep.subr.mxu0 0.0
    %v253 = vand.u32 %v54, 4294901760
    %v254 = vsub.f32 %v54, %v253
    %v255 = vand.u32 %v254, 4294901760
    %v256 = vsub.f32 %v254, %v255
    %v257 = vand.u32 %v256, 4294901760
    %258 = vmatpush1.msra.mxu0 %v257
    %259 = vmatprep.subr.mxu0 0.0
    %v260 = vand.u32 %v53, 4294901760
    %v261 = vsub.f32 %v53, %v260
    %v262 = vand.u32 %v261, 4294901760
    %v263 = vsub.f32 %v261, %v262
    %v264 = vand.u32 %v263, 4294901760
    %265 = vmatpush1.msra.mxu0 %v264
    %266 = vmatprep.subr.mxu0 0.0
    %v267 = vand.u32 %v52, 4294901760
    %v268 = vsub.f32 %v52, %v267
    %v269 = vand.u32 %v268, 4294901760
    %v270 = vsub.f32 %v268, %v269
    %v271 = vand.u32 %v270, 4294901760
    %272 = vmatpush1.msra.mxu0 %v271
    %273 = vmatprep.subr.mxu0 0.0
    %v274 = vand.u32 %v51, 4294901760
    %v275 = vsub.f32 %v51, %v274
    %v276 = vand.u32 %v275, 4294901760
    %v277 = vsub.f32 %v275, %v276
    %v278 = vand.u32 %v277, 4294901760
    %279 = vmatpush1.msra.mxu0 %v278
    %280 = vmatprep.subr.mxu0 0.0
    %v281 = vand.u32 %v50, 4294901760
    %v282 = vsub.f32 %v50, %v281
    %v283 = vand.u32 %v282, 4294901760
    %v284 = vsub.f32 %v282, %v283
    %v285 = vand.u32 %v284, 4294901760
    %286 = vmatpush1.msra.mxu0 %v285
    %287 = vmatprep.subr.mxu0 0.0
    %v288 = vand.u32 %v49, 4294901760
    %v289 = vsub.f32 %v49, %v288
    %v290 = vand.u32 %v289, 4294901760
    %v291 = vsub.f32 %v289, %v290
    %v292 = vand.u32 %v291, 4294901760
    %293 = vmatpush1.msra.mxu0 %v292
    %294 = vmatprep.subr.mxu0 0.0
    %v295 = vand.u32 %v48, 4294901760
    %v296 = vsub.f32 %v48, %v295
    %v297 = vand.u32 %v296, 4294901760
    %v298 = vsub.f32 %v296, %v297
    %v299 = vand.u32 %v298, 4294901760
    %300 = vmatpush1.msra.mxu0 %v299
    %301 = vmatprep.subr.mxu0 0.0
    %v302 = vand.u32 %v47, 4294901760
    %v303 = vsub.f32 %v47, %v302
    %v304 = vand.u32 %v303, 4294901760
    %v305 = vsub.f32 %v303, %v304
    %v306 = vand.u32 %v305, 4294901760
    %307 = vmatpush1.msra.mxu0 %v306
    %308 = vmatprep.subr.mxu0 0.0
    %v309 = vand.u32 %v46, 4294901760
    %v310 = vsub.f32 %v46, %v309
    %v311 = vand.u32 %v310, 4294901760
    %v312 = vsub.f32 %v310, %v311
    %v313 = vand.u32 %v312, 4294901760
    %314 = vmatpush1.msra.mxu0 %v313
    %315 = vmatprep.subr.mxu0 0.0
    %316 = vmatpush2.msra.mxu0 0.0
    %317 = vmatprep.subr.mxu0 0.0
    %318 = vmatpush2.msra.mxu0 0.0
    %319 = vmatprep.subr.mxu0 0.0
    %320 = vmatpush2.msra.mxu0 0.0
    %321 = vmatprep.subr.mxu0 0.0
    %322 = vmatpush2.msra.mxu0 0.0
    %323 = vmatprep.subr.mxu0 0.0
    %324 = vmatpush2.msra.mxu0 0.0
    %325 = vmatprep.subr.mxu0 0.0
    %326 = vmatpush2.msra.mxu0 0.0
    %327 = vmatprep.subr.mxu0 0.0
    %328 = vmatpush2.msra.mxu0 0.0
    %329 = vmatprep.subr.mxu0 0.0
    %330 = vmatpush2.msra.mxu0 0.0
    %331 = vmatprep.subr.mxu0 0.0
    %332 = vmatpush2.msra.mxu0 0.0
    %333 = vmatprep.subr.mxu0 0.0
    %334 = vmatpush2.msra.mxu0 0.0
    %335 = vmatprep.subr.mxu0 0.0
    %336 = vmatpush2.msra.mxu0 0.0
    %337 = vmatprep.subr.mxu0 0.0
    %338 = vmatpush2.msra.mxu0 0.0
    %339 = vmatprep.subr.mxu0 0.0
    %340 = vmatpush2.msra.mxu0 0.0
    %341 = vmatprep.subr.mxu0 0.0
    %342 = vmatpush2.msra.mxu0 0.0
    %343 = vmatprep.subr.mxu0 0.0
    %344 = vmatpush2.msra.mxu0 0.0
    %345 = vmatprep.subr.mxu0 0.0
    %346 = vmatpush2.msra.mxu0 0.0
    %347 = vmatprep.mubr.f32.mxu0 0.0
    %v348 = vand.u32 %v40, 4294901760
    %349 = vmatmul.mubr.f32.gmra.mxu0 %v348
    %v350 = vpop.f32.mrf.mxu0
    %v351 = vadd.f32 %v150, %v350
    %v352 = vpop.f32.mrf.mxu0
    %353 = vmatprep.mubr.f32.mxu0 0.0
    %v354 = vand.u32 %v41, 4294901760
    %355 = vmatmul.mubr.f32.gmra.mxu0 %v354
    %v356 = vpop.f32.mrf.mxu0
    %v357 = vadd.f32 %v160, %v356
    %v358 = vpop.f32.mrf.mxu0
    %359 = vmatprep.mubr.f32.mxu0 0.0
    %v360 = vand.u32 %v42, 4294901760
    %361 = vmatmul.mubr.f32.gmra.mxu0 %v360
    %v362 = vpop.f32.mrf.mxu0
    %v363 = vadd.f32 %v170, %v362
    %v364 = vpop.f32.mrf.mxu0
    %365 = vmatprep.mubr.f32.mxu0 0.0
    %v366 = vand.u32 %v43, 4294901760
    %367 = vmatmul.mubr.f32.gmra.mxu0 %v366
    %v368 = vpop.f32.mrf.mxu0
    %v369 = vadd.f32 %v180, %v368
    %v370 = vpop.f32.mrf.mxu0
    %371 = vmatprep.mubr.f32.mxu0 0.0
    %v372 = vand.u32 %v44, 4294901760
    %373 = vmatmul.mubr.f32.gmra.mxu0 %v372
    %v374 = vpop.f32.mrf.mxu0
    %v375 = vadd.f32 %v190, %v374
    %v376 = vpop.f32.mrf.mxu0
    %377 = vmatprep.mubr.f32.mxu0 0.0
    %v378 = vand.u32 %v45, 4294901760
    %379 = vmatmul.mubr.f32.gmra.mxu0 %v378
    %v380 = vpop.f32.mrf.mxu0
    %v381 = vadd.f32 %v200, %v380
    %v382 = vpop.f32.mrf.mxu0
    %383 = vdwg.mxu0
    %384 = vmatprep.subr.mxu0 0.0
    %v385 = vand.u32 %v61, 4294901760
    %v386 = vsub.f32 %v61, %v385
    %387 = vmatpush1.msra.mxu0 %v386
    %388 = vmatprep.subr.mxu0 0.0
    %v389 = vand.u32 %v60, 4294901760
    %v390 = vsub.f32 %v60, %v389
    %391 = vmatpush1.msra.mxu0 %v390
    %392 = vmatprep.subr.mxu0 0.0
    %v393 = vand.u32 %v59, 4294901760
    %v394 = vsub.f32 %v59, %v393
    %395 = vmatpush1.msra.mxu0 %v394
    %396 = vmatprep.subr.mxu0 0.0
    %v397 = vand.u32 %v58, 4294901760
    %v398 = vsub.f32 %v58, %v397
    %399 = vmatpush1.msra.mxu0 %v398
    %400 = vmatprep.subr.mxu0 0.0
    %v401 = vand.u32 %v57, 4294901760
    %v402 = vsub.f32 %v57, %v401
    %403 = vmatpush1.msra.mxu0 %v402
    %404 = vmatprep.subr.mxu0 0.0
    %v405 = vand.u32 %v56, 4294901760
    %v406 = vsub.f32 %v56, %v405
    %407 = vmatpush1.msra.mxu0 %v406
    %408 = vmatprep.subr.mxu0 0.0
    %v409 = vand.u32 %v55, 4294901760
    %v410 = vsub.f32 %v55, %v409
    %411 = vmatpush1.msra.mxu0 %v410
    %412 = vmatprep.subr.mxu0 0.0
    %v413 = vand.u32 %v54, 4294901760
    %v414 = vsub.f32 %v54, %v413
    %415 = vmatpush1.msra.mxu0 %v414
    %416 = vmatprep.subr.mxu0 0.0
    %v417 = vand.u32 %v53, 4294901760
    %v418 = vsub.f32 %v53, %v417
    %419 = vmatpush1.msra.mxu0 %v418
    %420 = vmatprep.subr.mxu0 0.0
    %v421 = vand.u32 %v52, 4294901760
    %v422 = vsub.f32 %v52, %v421
    %423 = vmatpush1.msra.mxu0 %v422
    %424 = vmatprep.subr.mxu0 0.0
    %v425 = vand.u32 %v51, 4294901760
    %v426 = vsub.f32 %v51, %v425
    %427 = vmatpush1.msra.mxu0 %v426
    %428 = vmatprep.subr.mxu0 0.0
    %v429 = vand.u32 %v50, 4294901760
    %v430 = vsub.f32 %v50, %v429
    %431 = vmatpush1.msra.mxu0 %v430
    %432 = vmatprep.subr.mxu0 0.0
    %v433 = vand.u32 %v49, 4294901760
    %v434 = vsub.f32 %v49, %v433
    %435 = vmatpush1.msra.mxu0 %v434
    %436 = vmatprep.subr.mxu0 0.0
    %v437 = vand.u32 %v48, 4294901760
    %v438 = vsub.f32 %v48, %v437
    %439 = vmatpush1.msra.mxu0 %v438
    %440 = vmatprep.subr.mxu0 0.0
    %v441 = vand.u32 %v47, 4294901760
    %v442 = vsub.f32 %v47, %v441
    %443 = vmatpush1.msra.mxu0 %v442
    %444 = vmatprep.subr.mxu0 0.0
    %v445 = vand.u32 %v46, 4294901760
    %v446 = vsub.f32 %v46, %v445
    %447 = vmatpush1.msra.mxu0 %v446
    %448 = vmatprep.subr.mxu0 0.0
    %449 = vmatpush2.msra.mxu0 0.0
    %450 = vmatprep.subr.mxu0 0.0
    %451 = vmatpush2.msra.mxu0 0.0
    %452 = vmatprep.subr.mxu0 0.0
    %453 = vmatpush2.msra.mxu0 0.0
    %454 = vmatprep.subr.mxu0 0.0
    %455 = vmatpush2.msra.mxu0 0.0
    %456 = vmatprep.subr.mxu0 0.0
    %457 = vmatpush2.msra.mxu0 0.0
    %458 = vmatprep.subr.mxu0 0.0
    %459 = vmatpush2.msra.mxu0 0.0
    %460 = vmatprep.subr.mxu0 0.0
    %461 = vmatpush2.msra.mxu0 0.0
    %462 = vmatprep.subr.mxu0 0.0
    %463 = vmatpush2.msra.mxu0 0.0
    %464 = vmatprep.subr.mxu0 0.0
    %465 = vmatpush2.msra.mxu0 0.0
    %466 = vmatprep.subr.mxu0 0.0
    %467 = vmatpush2.msra.mxu0 0.0
    %468 = vmatprep.subr.mxu0 0.0
    %469 = vmatpush2.msra.mxu0 0.0
    %470 = vmatprep.subr.mxu0 0.0
    %471 = vmatpush2.msra.mxu0 0.0
    %472 = vmatprep.subr.mxu0 0.0
    %473 = vmatpush2.msra.mxu0 0.0
    %474 = vmatprep.subr.mxu0 0.0
    %475 = vmatpush2.msra.mxu0 0.0
    %476 = vmatprep.subr.mxu0 0.0
    %477 = vmatpush2.msra.mxu0 0.0
    %478 = vmatprep.subr.mxu0 0.0
    %479 = vmatpush2.msra.mxu0 0.0
    %480 = vmatprep.mubr.f32.mxu0 0.0
    %v481 = vand.u32 %v40, 4294901760
    %v482 = vsub.f32 %v40, %v481
    %483 = vmatmul.mubr.f32.gmra.mxu0 %v482
    %v484 = vpop.f32.mrf.mxu0
    %v485 = vadd.f32 %v351, %v484
    %v486 = vpop.f32.mrf.mxu0
    %487 = vmatprep.mubr.f32.mxu0 0.0
    %v488 = vand.u32 %v41, 4294901760
    %v489 = vsub.f32 %v41, %v488
    %490 = vmatmul.mubr.f32.gmra.mxu0 %v489
    %v491 = vpop.f32.mrf.mxu0
    %v492 = vadd.f32 %v357, %v491
    %v493 = vpop.f32.mrf.mxu0
    %494 = vmatprep.mubr.f32.mxu0 0.0
    %v495 = vand.u32 %v42, 4294901760
    %v496 = vsub.f32 %v42, %v495
    %497 = vmatmul.mubr.f32.gmra.mxu0 %v496
    %v498 = vpop.f32.mrf.mxu0
    %v499 = vadd.f32 %v363, %v498
    %v500 = vpop.f32.mrf.mxu0
    %501 = vmatprep.mubr.f32.mxu0 0.0
    %v502 = vand.u32 %v43, 4294901760
    %v503 = vsub.f32 %v43, %v502
    %504 = vmatmul.mubr.f32.gmra.mxu0 %v503
    %v505 = vpop.f32.mrf.mxu0
    %v506 = vadd.f32 %v369, %v505
    %v507 = vpop.f32.mrf.mxu0
    %508 = vmatprep.mubr.f32.mxu0 0.0
    %v509 = vand.u32 %v44, 4294901760
    %v510 = vsub.f32 %v44, %v509
    %511 = vmatmul.mubr.f32.gmra.mxu0 %v510
    %v512 = vpop.f32.mrf.mxu0
    %v513 = vadd.f32 %v375, %v512
    %v514 = vpop.f32.mrf.mxu0
    %515 = vmatprep.mubr.f32.mxu0 0.0
    %v516 = vand.u32 %v45, 4294901760
    %v517 = vsub.f32 %v45, %v516
    %518 = vmatmul.mubr.f32.gmra.mxu0 %v517
    %v519 = vpop.f32.mrf.mxu0
    %v520 = vadd.f32 %v381, %v519
    %v521 = vpop.f32.mrf.mxu0
    %522 = vdwg.mxu0
    %523 = vmatprep.subr.mxu0 0.0
    %v524 = vand.u32 %v61, 4294901760
    %525 = vmatpush1.msra.mxu0 %v524
    %526 = vmatprep.subr.mxu0 0.0
    %v527 = vand.u32 %v60, 4294901760
    %528 = vmatpush1.msra.mxu0 %v527
    %529 = vmatprep.subr.mxu0 0.0
    %v530 = vand.u32 %v59, 4294901760
    %531 = vmatpush1.msra.mxu0 %v530
    %532 = vmatprep.subr.mxu0 0.0
    %v533 = vand.u32 %v58, 4294901760
    %534 = vmatpush1.msra.mxu0 %v533
    %535 = vmatprep.subr.mxu0 0.0
    %v536 = vand.u32 %v57, 4294901760
    %537 = vmatpush1.msra.mxu0 %v536
    %538 = vmatprep.subr.mxu0 0.0
    %v539 = vand.u32 %v56, 4294901760
    %540 = vmatpush1.msra.mxu0 %v539
    %541 = vmatprep.subr.mxu0 0.0
    %v542 = vand.u32 %v55, 4294901760
    %543 = vmatpush1.msra.mxu0 %v542
    %544 = vmatprep.subr.mxu0 0.0
    %v545 = vand.u32 %v54, 4294901760
    %546 = vmatpush1.msra.mxu0 %v545
    %547 = vmatprep.subr.mxu0 0.0
    %v548 = vand.u32 %v53, 4294901760
    %549 = vmatpush1.msra.mxu0 %v548
    %550 = vmatprep.subr.mxu0 0.0
    %v551 = vand.u32 %v52, 4294901760
    %552 = vmatpush1.msra.mxu0 %v551
    %553 = vmatprep.subr.mxu0 0.0
    %v554 = vand.u32 %v51, 4294901760
    %555 = vmatpush1.msra.mxu0 %v554
    %556 = vmatprep.subr.mxu0 0.0
    %v557 = vand.u32 %v50, 4294901760
    %558 = vmatpush1.msra.mxu0 %v557
    %559 = vmatprep.subr.mxu0 0.0
    %v560 = vand.u32 %v49, 4294901760
    %561 = vmatpush1.msra.mxu0 %v560
    %562 = vmatprep.subr.mxu0 0.0
    %v563 = vand.u32 %v48, 4294901760
    %564 = vmatpush1.msra.mxu0 %v563
    %565 = vmatprep.subr.mxu0 0.0
    %v566 = vand.u32 %v47, 4294901760
    %567 = vmatpush1.msra.mxu0 %v566
    %568 = vmatprep.subr.mxu0 0.0
    %v569 = vand.u32 %v46, 4294901760
    %570 = vmatpush1.msra.mxu0 %v569
    %571 = vmatprep.subr.mxu0 0.0
    %572 = vmatpush2.msra.mxu0 0.0
    %573 = vmatprep.subr.mxu0 0.0
    %574 = vmatpush2.msra.mxu0 0.0
    %575 = vmatprep.subr.mxu0 0.0
    %576 = vmatpush2.msra.mxu0 0.0
    %577 = vmatprep.subr.mxu0 0.0
    %578 = vmatpush2.msra.mxu0 0.0
    %579 = vmatprep.subr.mxu0 0.0
    %580 = vmatpush2.msra.mxu0 0.0
    %581 = vmatprep.subr.mxu0 0.0
    %582 = vmatpush2.msra.mxu0 0.0
    %583 = vmatprep.subr.mxu0 0.0
    %584 = vmatpush2.msra.mxu0 0.0
    %585 = vmatprep.subr.mxu0 0.0
    %586 = vmatpush2.msra.mxu0 0.0
    %587 = vmatprep.subr.mxu0 0.0
    %588 = vmatpush2.msra.mxu0 0.0
    %589 = vmatprep.subr.mxu0 0.0
    %590 = vmatpush2.msra.mxu0 0.0
    %591 = vmatprep.subr.mxu0 0.0
    %592 = vmatpush2.msra.mxu0 0.0
    %593 = vmatprep.subr.mxu0 0.0
    %594 = vmatpush2.msra.mxu0 0.0
    %595 = vmatprep.subr.mxu0 0.0
    %596 = vmatpush2.msra.mxu0 0.0
    %597 = vmatprep.subr.mxu0 0.0
    %598 = vmatpush2.msra.mxu0 0.0
    %599 = vmatprep.subr.mxu0 0.0
    %600 = vmatpush2.msra.mxu0 0.0
    %601 = vmatprep.subr.mxu0 0.0
    %602 = vmatpush2.msra.mxu0 0.0
    %603 = vmatprep.mubr.f32.mxu0 0.0
    %v604 = vand.u32 %v40, 4294901760
    %v605 = vsub.f32 %v40, %v604
    %v606 = vand.u32 %v605, 4294901760
    %607 = vmatmul.mubr.f32.gmra.mxu0 %v606
    %v608 = vpop.f32.mrf.mxu0
    %v609 = vadd.f32 %v485, %v608
    %v610 = vpop.f32.mrf.mxu0
    %611 = vmatprep.mubr.f32.mxu0 0.0
    %v612 = vand.u32 %v41, 4294901760
    %v613 = vsub.f32 %v41, %v612
    %v614 = vand.u32 %v613, 4294901760
    %615 = vmatmul.mubr.f32.gmra.mxu0 %v614
    %v616 = vpop.f32.mrf.mxu0
    %v617 = vadd.f32 %v492, %v616
    %v618 = vpop.f32.mrf.mxu0
    %619 = vmatprep.mubr.f32.mxu0 0.0
    %v620 = vand.u32 %v42, 4294901760
    %v621 = vsub.f32 %v42, %v620
    %v622 = vand.u32 %v621, 4294901760
    %623 = vmatmul.mubr.f32.gmra.mxu0 %v622
    %v624 = vpop.f32.mrf.mxu0
    %v625 = vadd.f32 %v499, %v624
    %v626 = vpop.f32.mrf.mxu0
    %627 = vmatprep.mubr.f32.mxu0 0.0
    %v628 = vand.u32 %v43, 4294901760
    %v629 = vsub.f32 %v43, %v628
    %v630 = vand.u32 %v629, 4294901760
    %631 = vmatmul.mubr.f32.gmra.mxu0 %v630
    %v632 = vpop.f32.mrf.mxu0
    %v633 = vadd.f32 %v506, %v632
    %v634 = vpop.f32.mrf.mxu0
    %635 = vmatprep.mubr.f32.mxu0 0.0
    %v636 = vand.u32 %v44, 4294901760
    %v637 = vsub.f32 %v44, %v636
    %v638 = vand.u32 %v637, 4294901760
    %639 = vmatmul.mubr.f32.gmra.mxu0 %v638
    %v640 = vpop.f32.mrf.mxu0
    %v641 = vadd.f32 %v513, %v640
    %v642 = vpop.f32.mrf.mxu0
    %643 = vmatprep.mubr.f32.mxu0 0.0
    %v644 = vand.u32 %v45, 4294901760
    %v645 = vsub.f32 %v45, %v644
    %v646 = vand.u32 %v645, 4294901760
    %647 = vmatmul.mubr.f32.gmra.mxu0 %v646
    %v648 = vpop.f32.mrf.mxu0
    %v649 = vadd.f32 %v520, %v648
    %v650 = vpop.f32.mrf.mxu0
    %651 = vdwg.mxu0
    %652 = vmatprep.subr.mxu0 0.0
    %v653 = vand.u32 %v61, 4294901760
    %v654 = vsub.f32 %v61, %v653
    %v655 = vand.u32 %v654, 4294901760
    %656 = vmatpush1.msra.mxu0 %v655
    %657 = vmatprep.subr.mxu0 0.0
    %v658 = vand.u32 %v60, 4294901760
    %v659 = vsub.f32 %v60, %v658
    %v660 = vand.u32 %v659, 4294901760
    %661 = vmatpush1.msra.mxu0 %v660
    %662 = vmatprep.subr.mxu0 0.0
    %v663 = vand.u32 %v59, 4294901760
    %v664 = vsub.f32 %v59, %v663
    %v665 = vand.u32 %v664, 4294901760
    %666 = vmatpush1.msra.mxu0 %v665
    %667 = vmatprep.subr.mxu0 0.0
    %v668 = vand.u32 %v58, 4294901760
    %v669 = vsub.f32 %v58, %v668
    %v670 = vand.u32 %v669, 4294901760
    %671 = vmatpush1.msra.mxu0 %v670
    %672 = vmatprep.subr.mxu0 0.0
    %v673 = vand.u32 %v57, 4294901760
    %v674 = vsub.f32 %v57, %v673
    %v675 = vand.u32 %v674, 4294901760
    %676 = vmatpush1.msra.mxu0 %v675
    %677 = vmatprep.subr.mxu0 0.0
    %v678 = vand.u32 %v56, 4294901760
    %v679 = vsub.f32 %v56, %v678
    %v680 = vand.u32 %v679, 4294901760
    %681 = vmatpush1.msra.mxu0 %v680
    %682 = vmatprep.subr.mxu0 0.0
    %v683 = vand.u32 %v55, 4294901760
    %v684 = vsub.f32 %v55, %v683
    %v685 = vand.u32 %v684, 4294901760
    %686 = vmatpush1.msra.mxu0 %v685
    %687 = vmatprep.subr.mxu0 0.0
    %v688 = vand.u32 %v54, 4294901760
    %v689 = vsub.f32 %v54, %v688
    %v690 = vand.u32 %v689, 4294901760
    %691 = vmatpush1.msra.mxu0 %v690
    %692 = vmatprep.subr.mxu0 0.0
    %v693 = vand.u32 %v53, 4294901760
    %v694 = vsub.f32 %v53, %v693
    %v695 = vand.u32 %v694, 4294901760
    %696 = vmatpush1.msra.mxu0 %v695
    %697 = vmatprep.subr.mxu0 0.0
    %v698 = vand.u32 %v52, 4294901760
    %v699 = vsub.f32 %v52, %v698
    %v700 = vand.u32 %v699, 4294901760
    %701 = vmatpush1.msra.mxu0 %v700
    %702 = vmatprep.subr.mxu0 0.0
    %v703 = vand.u32 %v51, 4294901760
    %v704 = vsub.f32 %v51, %v703
    %v705 = vand.u32 %v704, 4294901760
    %706 = vmatpush1.msra.mxu0 %v705
    %707 = vmatprep.subr.mxu0 0.0
    %v708 = vand.u32 %v50, 4294901760
    %v709 = vsub.f32 %v50, %v708
    %v710 = vand.u32 %v709, 4294901760
    %711 = vmatpush1.msra.mxu0 %v710
    %712 = vmatprep.subr.mxu0 0.0
    %v713 = vand.u32 %v49, 4294901760
    %v714 = vsub.f32 %v49, %v713
    %v715 = vand.u32 %v714, 4294901760
    %716 = vmatpush1.msra.mxu0 %v715
    %717 = vmatprep.subr.mxu0 0.0
    %v718 = vand.u32 %v48, 4294901760
    %v719 = vsub.f32 %v48, %v718
    %v720 = vand.u32 %v719, 4294901760
    %721 = vmatpush1.msra.mxu0 %v720
    %722 = vmatprep.subr.mxu0 0.0
    %v723 = vand.u32 %v47, 4294901760
    %v724 = vsub.f32 %v47, %v723
    %v725 = vand.u32 %v724, 4294901760
    %726 = vmatpush1.msra.mxu0 %v725
    %727 = vmatprep.subr.mxu0 0.0
    %v728 = vand.u32 %v46, 4294901760
    %v729 = vsub.f32 %v46, %v728
    %v730 = vand.u32 %v729, 4294901760
    %731 = vmatpush1.msra.mxu0 %v730
    %732 = vmatprep.subr.mxu0 0.0
    %733 = vmatpush2.msra.mxu0 0.0
    %734 = vmatprep.subr.mxu0 0.0
    %735 = vmatpush2.msra.mxu0 0.0
    %736 = vmatprep.subr.mxu0 0.0
    %737 = vmatpush2.msra.mxu0 0.0
    %738 = vmatprep.subr.mxu0 0.0
    %739 = vmatpush2.msra.mxu0 0.0
    %740 = vmatprep.subr.mxu0 0.0
    %741 = vmatpush2.msra.mxu0 0.0
    %742 = vmatprep.subr.mxu0 0.0
    %743 = vmatpush2.msra.mxu0 0.0
    %744 = vmatprep.subr.mxu0 0.0
    %745 = vmatpush2.msra.mxu0 0.0
    %746 = vmatprep.subr.mxu0 0.0
    %747 = vmatpush2.msra.mxu0 0.0
    %748 = vmatprep.subr.mxu0 0.0
    %749 = vmatpush2.msra.mxu0 0.0
    %750 = vmatprep.subr.mxu0 0.0
    %751 = vmatpush2.msra.mxu0 0.0
    %752 = vmatprep.subr.mxu0 0.0
    %753 = vmatpush2.msra.mxu0 0.0
    %754 = vmatprep.subr.mxu0 0.0
    %755 = vmatpush2.msra.mxu0 0.0
    %756 = vmatprep.subr.mxu0 0.0
    %757 = vmatpush2.msra.mxu0 0.0
    %758 = vmatprep.subr.mxu0 0.0
    %759 = vmatpush2.msra.mxu0 0.0
    %760 = vmatprep.subr.mxu0 0.0
    %761 = vmatpush2.msra.mxu0 0.0
    %762 = vmatprep.subr.mxu0 0.0
    %763 = vmatpush2.msra.mxu0 0.0
    %764 = vmatprep.mubr.f32.mxu0 0.0
    %v765 = vand.u32 %v40, 4294901760
    %766 = vmatmul.mubr.f32.gmra.mxu0 %v765
    %v767 = vpop.f32.mrf.mxu0
    %v768 = vadd.f32 %v609, %v767
    %v769 = vpop.f32.mrf.mxu0
    %770 = vmatprep.mubr.f32.mxu0 0.0
    %v771 = vand.u32 %v41, 4294901760
    %772 = vmatmul.mubr.f32.gmra.mxu0 %v771
    %v773 = vpop.f32.mrf.mxu0
    %v774 = vadd.f32 %v617, %v773
    %v775 = vpop.f32.mrf.mxu0
    %776 = vmatprep.mubr.f32.mxu0 0.0
    %v777 = vand.u32 %v42, 4294901760
    %778 = vmatmul.mubr.f32.gmra.mxu0 %v777
    %v779 = vpop.f32.mrf.mxu0
    %v780 = vadd.f32 %v625, %v779
    %v781 = vpop.f32.mrf.mxu0
    %782 = vmatprep.mubr.f32.mxu0 0.0
    %v783 = vand.u32 %v43, 4294901760
    %784 = vmatmul.mubr.f32.gmra.mxu0 %v783
    %v785 = vpop.f32.mrf.mxu0
    %v786 = vadd.f32 %v633, %v785
    %v787 = vpop.f32.mrf.mxu0
    %788 = vmatprep.mubr.f32.mxu0 0.0
    %v789 = vand.u32 %v44, 4294901760
    %790 = vmatmul.mubr.f32.gmra.mxu0 %v789
    %v791 = vpop.f32.mrf.mxu0
    %v792 = vadd.f32 %v641, %v791
    %v793 = vpop.f32.mrf.mxu0
    %794 = vmatprep.mubr.f32.mxu0 0.0
    %v795 = vand.u32 %v45, 4294901760
    %796 = vmatmul.mubr.f32.gmra.mxu0 %v795
    %v797 = vpop.f32.mrf.mxu0
    %v798 = vadd.f32 %v649, %v797
    %v799 = vpop.f32.mrf.mxu0
    %800 = vdwg.mxu0
    %801 = vmatprep.subr.mxu0 0.0
    %v802 = vand.u32 %v61, 4294901760
    %803 = vmatpush1.msra.mxu0 %v802
    %804 = vmatprep.subr.mxu0 0.0
    %v805 = vand.u32 %v60, 4294901760
    %806 = vmatpush1.msra.mxu0 %v805
    %807 = vmatprep.subr.mxu0 0.0
    %v808 = vand.u32 %v59, 4294901760
    %809 = vmatpush1.msra.mxu0 %v808
    %810 = vmatprep.subr.mxu0 0.0
    %v811 = vand.u32 %v58, 4294901760
    %812 = vmatpush1.msra.mxu0 %v811
    %813 = vmatprep.subr.mxu0 0.0
    %v814 = vand.u32 %v57, 4294901760
    %815 = vmatpush1.msra.mxu0 %v814
    %816 = vmatprep.subr.mxu0 0.0
    %v817 = vand.u32 %v56, 4294901760
    %818 = vmatpush1.msra.mxu0 %v817
    %819 = vmatprep.subr.mxu0 0.0
    %v820 = vand.u32 %v55, 4294901760
    %821 = vmatpush1.msra.mxu0 %v820
    %822 = vmatprep.subr.mxu0 0.0
    %v823 = vand.u32 %v54, 4294901760
    %824 = vmatpush1.msra.mxu0 %v823
    %825 = vmatprep.subr.mxu0 0.0
    %v826 = vand.u32 %v53, 4294901760
    %827 = vmatpush1.msra.mxu0 %v826
    %828 = vmatprep.subr.mxu0 0.0
    %v829 = vand.u32 %v52, 4294901760
    %830 = vmatpush1.msra.mxu0 %v829
    %831 = vmatprep.subr.mxu0 0.0
    %v832 = vand.u32 %v51, 4294901760
    %833 = vmatpush1.msra.mxu0 %v832
    %834 = vmatprep.subr.mxu0 0.0
    %v835 = vand.u32 %v50, 4294901760
    %836 = vmatpush1.msra.mxu0 %v835
    %837 = vmatprep.subr.mxu0 0.0
    %v838 = vand.u32 %v49, 4294901760
    %839 = vmatpush1.msra.mxu0 %v838
    %840 = vmatprep.subr.mxu0 0.0
    %v841 = vand.u32 %v48, 4294901760
    %842 = vmatpush1.msra.mxu0 %v841
    %843 = vmatprep.subr.mxu0 0.0
    %v844 = vand.u32 %v47, 4294901760
    %845 = vmatpush1.msra.mxu0 %v844
    %846 = vmatprep.subr.mxu0 0.0
    %v847 = vand.u32 %v46, 4294901760
    %848 = vmatpush1.msra.mxu0 %v847
    %849 = vmatprep.subr.mxu0 0.0
    %850 = vmatpush2.msra.mxu0 0.0
    %851 = vmatprep.subr.mxu0 0.0
    %852 = vmatpush2.msra.mxu0 0.0
    %853 = vmatprep.subr.mxu0 0.0
    %854 = vmatpush2.msra.mxu0 0.0
    %855 = vmatprep.subr.mxu0 0.0
    %856 = vmatpush2.msra.mxu0 0.0
    %857 = vmatprep.subr.mxu0 0.0
    %858 = vmatpush2.msra.mxu0 0.0
    %859 = vmatprep.subr.mxu0 0.0
    %860 = vmatpush2.msra.mxu0 0.0
    %861 = vmatprep.subr.mxu0 0.0
    %862 = vmatpush2.msra.mxu0 0.0
    %863 = vmatprep.subr.mxu0 0.0
    %864 = vmatpush2.msra.mxu0 0.0
    %865 = vmatprep.subr.mxu0 0.0
    %866 = vmatpush2.msra.mxu0 0.0
    %867 = vmatprep.subr.mxu0 0.0
    %868 = vmatpush2.msra.mxu0 0.0
    %869 = vmatprep.subr.mxu0 0.0
    %870 = vmatpush2.msra.mxu0 0.0
    %871 = vmatprep.subr.mxu0 0.0
    %872 = vmatpush2.msra.mxu0 0.0
    %873 = vmatprep.subr.mxu0 0.0
    %874 = vmatpush2.msra.mxu0 0.0
    %875 = vmatprep.subr.mxu0 0.0
    %876 = vmatpush2.msra.mxu0 0.0
    %877 = vmatprep.subr.mxu0 0.0
    %878 = vmatpush2.msra.mxu0 0.0
    %879 = vmatprep.subr.mxu0 0.0
    %880 = vmatpush2.msra.mxu0 0.0
    %881 = vmatprep.mubr.f32.mxu0 0.0
    %v882 = vand.u32 %v40, 4294901760
    %883 = vmatmul.mubr.f32.gmra.mxu0 %v882
    %v884 = vpop.f32.mrf.mxu0
    %v885 = vadd.f32 %v768, %v884
    %v886 = vpop.f32.mrf.mxu0
    %887 = vmatprep.mubr.f32.mxu0 0.0
    %v888 = vand.u32 %v41, 4294901760
    %889 = vmatmul.mubr.f32.gmra.mxu0 %v888
    %v890 = vpop.f32.mrf.mxu0
    %v891 = vadd.f32 %v774, %v890
    %v892 = vpop.f32.mrf.mxu0
    %893 = vmatprep.mubr.f32.mxu0 0.0
    %v894 = vand.u32 %v42, 4294901760
    %895 = vmatmul.mubr.f32.gmra.mxu0 %v894
    %v896 = vpop.f32.mrf.mxu0
    %v897 = vadd.f32 %v780, %v896
    %v898 = vpop.f32.mrf.mxu0
    %899 = vmatprep.mubr.f32.mxu0 0.0
    %v900 = vand.u32 %v43, 4294901760
    %901 = vmatmul.mubr.f32.gmra.mxu0 %v900
    %v902 = vpop.f32.mrf.mxu0
    %v903 = vadd.f32 %v786, %v902
    %v904 = vpop.f32.mrf.mxu0
    %905 = vmatprep.mubr.f32.mxu0 0.0
    %v906 = vand.u32 %v44, 4294901760
    %907 = vmatmul.mubr.f32.gmra.mxu0 %v906
    %v908 = vpop.f32.mrf.mxu0
    %v909 = vadd.f32 %v792, %v908
    %v910 = vpop.f32.mrf.mxu0
    %911 = vmatprep.mubr.f32.mxu0 0.0
    %v912 = vand.u32 %v45, 4294901760
    %913 = vmatmul.mubr.f32.gmra.mxu0 %v912
    %v914 = vpop.f32.mrf.mxu0
    %v915 = vadd.f32 %v798, %v914
    %v916 = vpop.f32.mrf.mxu0
    %917 = vdwg.mxu0
    %918 = vst [vmem:[#allocation7] sm:$0xff] %v885
    %919 = vst [vmem:[#allocation7 + $0x8] sm:$0xff] %v891
    %920 = vst [vmem:[#allocation7 + $0x10] sm:$0xff] %v897
    %921 = vst [vmem:[#allocation7 + $0x18] sm:$0xff] %v903
    %922 = vst [vmem:[#allocation7 + $0x20] sm:$0xff] %v909
    %923 = vst [vmem:[#allocation7 + $0x28] sm:$0xff] %v915
    // Predicated region
    $region18: #{tpu_custom_call.1} parent=1 // pred_check
      _
    $region19: #{tpu_custom_call.1} parent=1 // pred_check_branch
      %925 = sbr.rel (0) target = $region21
    $region20: #{tpu_custom_call.1} parent=1 // pred_region
      %s927 = ssub.s32 768, 768
      %928 = vsyncadd [#allocation4], %s927
      %s929 = sshll.u32 [#allocation7], 4
      %s930 = int_to_ptr.vmem [resolvable:$true] %s929
      %935 = dma.vmem_to_hbm [thread:$0]  %s930, 768, %s2, [#allocation4], 128, 128, 8
    $region21: #{tpu_custom_call.1} parent=1 // pred_fallthru
      _
    // Predicated region
    $region22: #{tpu_custom_call.1} parent=1 // pred_check
      _
    $region23: #{tpu_custom_call.1} parent=1 // pred_check_branch
      %937 = sbr.rel (0) target = $region25
    $region24: #{tpu_custom_call.1} parent=1 // pred_region
      %938 = dma.done [#allocation4], 768
    $region25: #{tpu_custom_call.1} parent=1 // pred_fallthru
      _
    %939 = vsyncpa [#allocation3], 1
    %940 = vsyncpa [#allocation6], 1
    %941 = vsyncpa [#allocation4], 1

</llo_original>
